<compile_context>
chip_gen: v7x
topology: tpu7x:2x2x1
jax: 0.10.0
libtpu: 0.0.40
codegen_flags: <defaults>
</compile_context>

<pallas_src>
import functools

import jax
import jax.numpy as jnp
from jax.experimental import pallas as pl
from jax.experimental.pallas import tpu as pltpu

# Generation-aware VMEM budgeting: total tile footprint is held under 24 MiB
# (safe for v7x's 64 MiB physical VMEM); the scoped limit gets 8 MiB headroom.
VMEM_TILE_BUDGET_BYTES = 24 * 1024 * 1024
VMEM_LIMIT_BYTES = 32 * 1024 * 1024

_BF16 = 2
_F32 = 4


def _choose_q_tile(batch, lq, lk, dim, ctx_dim, num_heads):
    """Pick the q-row tile so the TOTAL VMEM footprint (double-buffered
    input/output blocks + resident weights + live in-kernel temporaries) stays
    under VMEM_TILE_BUDGET_BYTES on every TPU generation."""
    # tq-independent terms.
    fixed = (
        2 * lk * ctx_dim * _BF16               # context block (2 pipeline bufs)
        + 2 * dim * dim * _BF16                # Wq^T (grid-invariant, 2 bufs)
        + 2 * ctx_dim * (2 * dim) * _BF16      # [Wk^T | Wv^T] (2 bufs)
        + lk * (2 * dim) * (_F32 + _BF16)      # in-kernel kv f32 + bf16 scratch
    )
    # Per-q-row terms.
    per_row = (
        2 * dim * _BF16                        # q block (2 bufs)
        + 2 * dim * _F32                       # context-vector output (2 bufs)
        + 2 * num_heads * lk * _F32            # attn-weights output (2 bufs)
        + dim * (_F32 + _BF16)                 # in-kernel qp (f32 + bf16 copy)
        + 3 * lk * _F32 + lk * _BF16           # live s / e / p (+ bf16 p)
        + dim * _F32                           # concatenated per-head outputs
    )
    avail = VMEM_TILE_BUDGET_BYTES - fixed
    if avail < per_row * 8:
        raise NotImplementedError(
            "context / weights / score rows exceed the VMEM tile budget; "
            "TODO(synk): Lk-tiled two-pass softmax + N-tiled projection path.")
    tq = min(lq, avail // per_row, 512)        # 512 caps per-step latency
    if tq < lq:
        tq = max(8, (tq // 8) * 8)             # sublane-aligned tiles
        if tq >= 128:
            tq = (tq // 128) * 128             # MXU-friendly when large
    # v7x megacore: make sure both TensorCores get at least one grid step.
    if batch * pl.cdiv(lq, tq) < 2 and lq >= 16:
        tq = max(8, ((lq // 2 + 7) // 8) * 8)
    return tq


# ---------------------------------------------------------------------------
# Fused projection + multi-head attention kernel
# Grid: (batch, q-tiles).  Per step it sees:
#   q_ref   (tq, dim)        bf16   (pos-emb already added, scale in Wq^T)
#   ctx_ref (Lk, ctx_dim)    bf16
#   wq_ref  (dim, dim)       bf16   grid-invariant
#   wkv_ref (ctx_dim, 2*dim) bf16   grid-invariant
#   o_ref   (tq, dim)        f32    lane-dense head-merged context vector
#   w_ref   (H, tq, Lk)      f32    attention weights
#   kv_scr  (Lk, 2*dim)      bf16   per-batch K|V projection cache
# ---------------------------------------------------------------------------
def _cross_attn_kernel(q_ref, ctx_ref, wq_ref, wkv_ref, o_ref, w_ref, kv_scr,
                       *, num_heads, head_dim, dim):
    # K/V projection once per batch element; the q-tile axis is the inner
    # ("arbitrary") grid axis so program_id(1) == 0 is its first step.
    @pl.when(pl.program_id(1) == 0)
    def _():
        kv = jnp.dot(ctx_ref[...], wkv_ref[...],
                     preferred_element_type=jnp.float32)        # (Lk, 2*dim)
        kv_scr[...] = kv.astype(jnp.bfloat16)

    # Q projection for this q tile (dim**-0.5 already folded into Wq^T).
    qp = jnp.dot(q_ref[...], wq_ref[...],
                 preferred_element_type=jnp.float32)            # (tq, dim)
    qp_b = qp.astype(jnp.bfloat16)
    kv_b = kv_scr[...]                                          # (Lk, 2*dim)

    outs = []
    for h in range(num_heads):                                  # unrolled
        lo = h * head_dim
        # Static lane slices of the head-merged projections (no XLA transposes).
        q_h = qp_b[:, lo:lo + head_dim]                         # (tq, hd)
        k_h = kv_b[:, lo:lo + head_dim]                         # (Lk, hd)
        v_h = kv_b[:, dim + lo:dim + lo + head_dim]             # (Lk, hd)

        # scores = q @ k^T (bf16 MXU, f32 accumulate); softmax math in f32.
        s = jax.lax.dot_general(q_h, k_h, (((1,), (1,)), ((), ())),
                                preferred_element_type=jnp.float32)  # (tq, Lk)
        s = s - jnp.max(s, axis=-1, keepdims=True)
        e = jnp.exp(s)
        denom = jnp.sum(e, axis=-1, keepdims=True)
        inv = pl.reciprocal(denom, approx=True)                 # EUP slot
        inv = inv * (2.0 - denom * inv)                         # 1 Newton step
        p = e * inv
        w_ref[h, :, :] = p
        outs.append(jnp.dot(p.astype(jnp.bfloat16), v_h,
                            preferred_element_type=jnp.float32))

    # Single lane-dense (tq, dim) store of the head-merged context vector.
    o_ref[...] = jnp.concatenate(outs, axis=-1).astype(o_ref.dtype)


# ---------------------------------------------------------------------------
# Parameter prep (once, outside the per-call hot path)
# ---------------------------------------------------------------------------
def prepare_params(raw_params, dim):
    """Pre-transpose torch-layout weights, fold dim**-0.5 into Wq, fuse Wk/Wv,
    and store in bf16 (half the weight HBM/VMEM traffic, bf16 MXU operands)."""
    scale = float(dim) ** (-0.5)          # matches PyTorch: dim ** -0.5
    wq_t = jnp.asarray(raw_params["Wq"], jnp.float32).T * scale   # (dim, dim)
    wk_t = jnp.asarray(raw_params["Wk"], jnp.float32).T           # (ctx, dim)
    wv_t = jnp.asarray(raw_params["Wv"], jnp.float32).T           # (ctx, dim)
    wkv_t = jnp.concatenate([wk_t, wv_t], axis=1)                 # (ctx, 2*dim)
    return {"WqT_scaled": wq_t.astype(jnp.bfloat16),
            "WkvT": wkv_t.astype(jnp.bfloat16)}


# ---------------------------------------------------------------------------
# CrossAttention forward
# ---------------------------------------------------------------------------
def cross_attention_forward(prep, q, context, num_heads,
                            query_pos_emb=None, key_pos_emb=None):
    b, lq, dim = q.shape
    _, lk, ctx_dim = context.shape
    assert dim % num_heads == 0
    head_dim = dim // num_heads

    if query_pos_emb is not None:
        q = q + query_pos_emb
    if key_pos_emb is not None:
        context = context + key_pos_emb

    # bf16 MXU operands (f32 accumulation happens in-kernel).
    qb = q.astype(jnp.bfloat16)
    ctxb = context.astype(jnp.bfloat16)

    tq = _choose_q_tile(b, lq, lk, dim, ctx_dim, num_heads)
    grid = (b, pl.cdiv(lq, tq))
    # NOTE: a partial tail q tile only produces garbage in the padded rows;
    # all softmax / matmul math is row-local so valid rows are unaffected and
    # the padded rows are dropped by the masked writeback.

    kernel = functools.partial(_cross_attn_kernel, num_heads=num_heads,
                               head_dim=head_dim, dim=dim)

    out, attn = pl.pallas_call(
        kernel,
        out_shape=(
            jax.ShapeDtypeStruct((b, lq, dim), jnp.float32),
            jax.ShapeDtypeStruct((b, num_heads, lq, lk), jnp.float32),
        ),
        grid=grid,
        in_specs=[
            pl.BlockSpec((None, tq, dim), lambda bi, qi: (bi, qi, 0)),
            pl.BlockSpec((None, lk, ctx_dim), lambda bi, qi: (bi, 0, 0)),
            pl.BlockSpec((dim, dim), lambda bi, qi: (0, 0)),
            pl.BlockSpec((ctx_dim, 2 * dim), lambda bi, qi: (0, 0)),
        ],
        out_specs=(
            pl.BlockSpec((None, tq, dim), lambda bi, qi: (bi, qi, 0)),
            pl.BlockSpec((None, num_heads, tq, lk),
                         lambda bi, qi: (bi, 0, qi, 0)),
        ),
        scratch_shapes=[pltpu.VMEM((lk, 2 * dim), jnp.bfloat16)],
        compiler_params=pltpu.CompilerParams(
            # batch axis is megacore-parallel; q-tile axis stays "arbitrary"
            # so the per-batch KV scratch carry (pl.when(qi == 0)) is
            # guaranteed to run on the same core as its consumers.
            dimension_semantics=("parallel", "arbitrary"),
            vmem_limit_bytes=VMEM_LIMIT_BYTES,
        ),
    )(qb, ctxb, prep["WqT_scaled"], prep["WkvT"])
    return out, attn


# ---------------------------------------------------------------------------
# Pure-JAX f32 reference (mirrors the PyTorch forward, eval mode)
# ---------------------------------------------------------------------------
def reference_forward(params, q, context, num_heads):
    b, lq, dim = q.shape
    _, lk, _ = context.shape
    hd = dim // num_heads
    scale = float(dim) ** (-0.5)
    qp = q @ params["Wq"].T
    kp = context @ params["Wk"].T
    vp = context @ params["Wv"].T
    qh = qp.reshape(b, lq, num_heads, hd).transpose(0, 2, 1, 3)
    kh = kp.reshape(b, lk, num_heads, hd).transpose(0, 2, 1, 3)
    vh = vp.reshape(b, lk, num_heads, hd).transpose(0, 2, 1, 3)
    s = jnp.einsum("bhqd,bhkd->bhqk", qh, kh) * scale
    w = jax.nn.softmax(s, axis=-1)
    o = jnp.einsum("bhqk,bhkd->bhqd", w, vh)
    return o.transpose(0, 2, 1, 3).reshape(b, lq, dim), w


if __name__ == "__main__":
    # Small shapes consistent with the module defaults (num_heads=8).
    B, Lq, Lk = 2, 8, 8
    dim, context_dim, num_heads = 32, 16, 8

    key = jax.random.PRNGKey(0)
    k1, k2, k3, k4, k5 = jax.random.split(key, 5)

    # Deterministic synthetic parameters (torch nn.Linear layout: (out, in)).
    params = {
        "Wq": jax.random.normal(k1, (dim, dim), jnp.float32) * 0.05,
        "Wk": jax.random.normal(k2, (dim, context_dim), jnp.float32) * 0.05,
        "Wv": jax.random.normal(k3, (dim, context_dim), jnp.float32) * 0.05,
    }
    prep = prepare_params(params, dim)

    q = jax.random.normal(k4, (B, Lq, dim), jnp.float32)
    context = jax.random.normal(k5, (B, Lk, context_dim), jnp.float32)

    out, attn = cross_attention_forward(prep, q, context, num_heads)
    out = jax.block_until_ready(out)
    attn = jax.block_until_ready(attn)

    ref_out, ref_attn = reference_forward(params, q, context, num_heads)
    assert out.shape == (B, Lq, dim)
    assert attn.shape == (B, num_heads, Lq, Lk)
    # bf16 MXU operands -> compare against the f32 reference at bf16 tolerance.
    assert jnp.allclose(out, ref_out, atol=2e-2, rtol=2e-2)
    assert jnp.allclose(attn, ref_attn, atol=2e-2, rtol=2e-2)

    print("KERNEL_OK")
</pallas_src>

<mosaic_0001>
module attributes {stable_mosaic.version = 11 : i64} {
  func.func @_cross_attn_kernel(%arg0: i32, %arg1: i32, %arg2: memref<1x8x32xbf16, #tpu.memory_space<vmem>>, %arg3: memref<1x8x16xbf16, #tpu.memory_space<vmem>>, %arg4: memref<32x32xbf16, #tpu.memory_space<vmem>>, %arg5: memref<16x64xbf16, #tpu.memory_space<vmem>>, %arg6: memref<1x8x32xf32, #tpu.memory_space<vmem>>, %arg7: memref<1x8x8x8xf32, #tpu.memory_space<vmem>>, %arg8: memref<8x64xbf16, #tpu.memory_space<vmem>>) attributes {dimension_semantics = [#tpu.dimension_semantics<parallel>, #tpu.dimension_semantics<arbitrary>], iteration_bounds = array<i64: 2, 1>, scalar_prefetch = 0 : i64, scratch_operands = 1 : i64, tpu.core_type = #tpu.core_type<tc>, window_params = [{transform_indices = @transform_0, window_bounds = array<i64: 1, 8, 32>}, {transform_indices = @transform_1, window_bounds = array<i64: 1, 8, 16>}, {pipeline_mode = #tpu.pipeline_mode<synchronous>, transform_indices = @transform_2, window_bounds = array<i64: 32, 32>}, {pipeline_mode = #tpu.pipeline_mode<synchronous>, transform_indices = @transform_3, window_bounds = array<i64: 16, 64>}, {transform_indices = @transform_4, window_bounds = array<i64: 1, 8, 32>}, {transform_indices = @transform_5, window_bounds = array<i64: 1, 8, 8, 8>}]} {
    %c0_i32 = arith.constant 0 : i32
    %0 = arith.cmpi eq, %arg1, %c0_i32 : i32
    %1 = arith.extui %0 : i1 to i32
    %c0_i32_0 = arith.constant 0 : i32
    %2 = arith.cmpi ne, %1, %c0_i32_0 : i32
    scf.if %2 {
      %c0_75 = arith.constant 0 : index
      %c0_76 = arith.constant 0 : index
      %c0_77 = arith.constant 0 : index
      %197 = vector.load %arg3[%c0_75, %c0_76, %c0_77] : memref<1x8x16xbf16, #tpu.memory_space<vmem>>, vector<1x8x16xbf16>
      %198 = vector.shape_cast %197 : vector<1x8x16xbf16> to vector<8x16xbf16>
      %c0_78 = arith.constant 0 : index
      %c0_79 = arith.constant 0 : index
      %199 = vector.load %arg5[%c0_78, %c0_79] : memref<16x64xbf16, #tpu.memory_space<vmem>>, vector<16x64xbf16>
      %cst_80 = arith.constant dense<0.000000e+00> : vector<8x64xf32>
      %200 = tpu.matmul %198, %199, %cst_80 {dimension_numbers = #tpu.dot_dimension_numbers<[1], [0], [0], [1], [0, 0, 1, 1], [], []>} : vector<8x16xbf16>, vector<16x64xbf16>, vector<8x64xf32> -> vector<8x64xf32>
      %201 = arith.truncf %200 : vector<8x64xf32> to vector<8x64xbf16>
      %c0_81 = arith.constant 0 : index
      %c0_82 = arith.constant 0 : index
      %202 = vector.load %arg8[%c0_81, %c0_82] : memref<8x64xbf16, #tpu.memory_space<vmem>>, vector<8x64xbf16>
      tpu.vector_store %arg8[%c0_81, %c0_82], %201 {strides = array<i32>} : memref<8x64xbf16, #tpu.memory_space<vmem>>, vector<8x64xbf16>,
    } else {
    }
    %c0 = arith.constant 0 : index
    %c0_1 = arith.constant 0 : index
    %c0_2 = arith.constant 0 : index
    %3 = vector.load %arg2[%c0, %c0_1, %c0_2] : memref<1x8x32xbf16, #tpu.memory_space<vmem>>, vector<1x8x32xbf16>
    %4 = vector.shape_cast %3 : vector<1x8x32xbf16> to vector<8x32xbf16>
    %c0_3 = arith.constant 0 : index
    %c0_4 = arith.constant 0 : index
    %5 = vector.load %arg4[%c0_3, %c0_4] : memref<32x32xbf16, #tpu.memory_space<vmem>>, vector<32x32xbf16>
    %cst = arith.constant dense<0.000000e+00> : vector<8x32xf32>
    %6 = tpu.matmul %4, %5, %cst {dimension_numbers = #tpu.dot_dimension_numbers<[1], [0], [0], [1], [0, 0, 1, 1], [], []>} : vector<8x32xbf16>, vector<32x32xbf16>, vector<8x32xf32> -> vector<8x32xf32>
    %7 = arith.truncf %6 : vector<8x32xf32> to vector<8x32xbf16>
    %c0_5 = arith.constant 0 : index
    %c0_6 = arith.constant 0 : index
    %8 = vector.load %arg8[%c0_5, %c0_6] : memref<8x64xbf16, #tpu.memory_space<vmem>>, vector<8x64xbf16>
    %9 = vector.extract_strided_slice %7 {offsets = [0, 0], sizes = [8, 4], strides = [1, 1]} : vector<8x32xbf16> to vector<8x4xbf16>
    %10 = vector.extract_strided_slice %8 {offsets = [0, 0], sizes = [8, 4], strides = [1, 1]} : vector<8x64xbf16> to vector<8x4xbf16>
    %11 = vector.extract_strided_slice %8 {offsets = [0, 32], sizes = [8, 4], strides = [1, 1]} : vector<8x64xbf16> to vector<8x4xbf16>
    %cst_7 = arith.constant dense<0.000000e+00> : vector<8x8xf32>
    %12 = tpu.matmul %9, %10, %cst_7 {dimension_numbers = #tpu.dot_dimension_numbers<[1], [1], [0], [0], [0, 0, 1, 0], [], []>} : vector<8x4xbf16>, vector<8x4xbf16>, vector<8x8xf32> -> vector<8x8xf32>
    %cst_8 = arith.constant dense<0xFF800000> : vector<8xf32>
    %13 = vector.multi_reduction <maximumf>, %12, %cst_8 [1] : vector<8x8xf32> to vector<8xf32>
    %14 = vector.shape_cast %13 : vector<8xf32> to vector<8x1xf32>
    %15 = vector.broadcast %14 : vector<8x1xf32> to vector<8x8xf32>
    %16 = arith.subf %12, %15 : vector<8x8xf32>
    %17 = math.exp %16 : vector<8x8xf32>
    %cst_9 = arith.constant dense<0.000000e+00> : vector<8xf32>
    %18 = vector.multi_reduction <add>, %17, %cst_9 [1] : vector<8x8xf32> to vector<8xf32>
    %19 = vector.shape_cast %18 : vector<8xf32> to vector<8x1xf32>
    %20 = tpu.reciprocal %19 {approx = true} : vector<8x1xf32> -> vector<8x1xf32>
    %21 = arith.mulf %19, %20 : vector<8x1xf32>
    %cst_10 = arith.constant 2.000000e+00 : f32
    %22 = vector.broadcast %cst_10 : f32 to vector<8x1xf32>
    %23 = arith.subf %22, %21 : vector<8x1xf32>
    %24 = arith.mulf %20, %23 : vector<8x1xf32>
    %25 = vector.broadcast %24 : vector<8x1xf32> to vector<8x8xf32>
    %26 = arith.mulf %17, %25 : vector<8x8xf32>
    %c0_11 = arith.constant 0 : index
    %c0_12 = arith.constant 0 : index
    %c0_13 = arith.constant 0 : index
    %c0_14 = arith.constant 0 : index
    %27 = vector.load %arg7[%c0_11, %c0_12, %c0_13, %c0_14] : memref<1x8x8x8xf32, #tpu.memory_space<vmem>>, vector<1x1x8x8xf32>
    %28 = vector.shape_cast %27 : vector<1x1x8x8xf32> to vector<8x8xf32>
    %29 = vector.shape_cast %26 : vector<8x8xf32> to vector<1x1x8x8xf32>
    tpu.vector_store %arg7[%c0_11, %c0_12, %c0_13, %c0_14], %29 {strides = array<i32>} : memref<1x8x8x8xf32, #tpu.memory_space<vmem>>, vector<1x1x8x8xf32>,
    %30 = arith.truncf %26 : vector<8x8xf32> to vector<8x8xbf16>
    %cst_15 = arith.constant dense<0.000000e+00> : vector<8x4xf32>
    %31 = tpu.matmul %30, %11, %cst_15 {dimension_numbers = #tpu.dot_dimension_numbers<[1], [0], [0], [1], [0, 0, 1, 1], [], []>} : vector<8x8xbf16>, vector<8x4xbf16>, vector<8x4xf32> -> vector<8x4xf32>
    %32 = vector.extract_strided_slice %7 {offsets = [0, 4], sizes = [8, 4], strides = [1, 1]} : vector<8x32xbf16> to vector<8x4xbf16>
    %33 = vector.extract_strided_slice %8 {offsets = [0, 4], sizes = [8, 4], strides = [1, 1]} : vector<8x64xbf16> to vector<8x4xbf16>
    %34 = vector.extract_strided_slice %8 {offsets = [0, 36], sizes = [8, 4], strides = [1, 1]} : vector<8x64xbf16> to vector<8x4xbf16>
    %cst_16 = arith.constant dense<0.000000e+00> : vector<8x8xf32>
    %35 = tpu.matmul %32, %33, %cst_16 {dimension_numbers = #tpu.dot_dimension_numbers<[1], [1], [0], [0], [0, 0, 1, 0], [], []>} : vector<8x4xbf16>, vector<8x4xbf16>, vector<8x8xf32> -> vector<8x8xf32>
    %cst_17 = arith.constant dense<0xFF800000> : vector<8xf32>
    %36 = vector.multi_reduction <maximumf>, %35, %cst_17 [1] : vector<8x8xf32> to vector<8xf32>
    %37 = vector.shape_cast %36 : vector<8xf32> to vector<8x1xf32>
    %38 = vector.broadcast %37 : vector<8x1xf32> to vector<8x8xf32>
    %39 = arith.subf %35, %38 : vector<8x8xf32>
    %40 = math.exp %39 : vector<8x8xf32>
    %cst_18 = arith.constant dense<0.000000e+00> : vector<8xf32>
    %41 = vector.multi_reduction <add>, %40, %cst_18 [1] : vector<8x8xf32> to vector<8xf32>
    %42 = vector.shape_cast %41 : vector<8xf32> to vector<8x1xf32>
    %43 = tpu.reciprocal %42 {approx = true} : vector<8x1xf32> -> vector<8x1xf32>
    %44 = arith.mulf %42, %43 : vector<8x1xf32>
    %cst_19 = arith.constant 2.000000e+00 : f32
    %45 = vector.broadcast %cst_19 : f32 to vector<8x1xf32>
    %46 = arith.subf %45, %44 : vector<8x1xf32>
    %47 = arith.mulf %43, %46 : vector<8x1xf32>
    %48 = vector.broadcast %47 : vector<8x1xf32> to vector<8x8xf32>
    %49 = arith.mulf %40, %48 : vector<8x8xf32>
    %c0_20 = arith.constant 0 : index
    %c1 = arith.constant 1 : index
    %c0_21 = arith.constant 0 : index
    %c0_22 = arith.constant 0 : index
    %50 = vector.load %arg7[%c0_20, %c1, %c0_21, %c0_22] : memref<1x8x8x8xf32, #tpu.memory_space<vmem>>, vector<1x1x8x8xf32>
    %51 = vector.shape_cast %50 : vector<1x1x8x8xf32> to vector<8x8xf32>
    %52 = vector.shape_cast %49 : vector<8x8xf32> to vector<1x1x8x8xf32>
    tpu.vector_store %arg7[%c0_20, %c1, %c0_21, %c0_22], %52 {strides = array<i32>} : memref<1x8x8x8xf32, #tpu.memory_space<vmem>>, vector<1x1x8x8xf32>,
    %53 = arith.truncf %49 : vector<8x8xf32> to vector<8x8xbf16>
    %cst_23 = arith.constant dense<0.000000e+00> : vector<8x4xf32>
    %54 = tpu.matmul %53, %34, %cst_23 {dimension_numbers = #tpu.dot_dimension_numbers<[1], [0], [0], [1], [0, 0, 1, 1], [], []>} : vector<8x8xbf16>, vector<8x4xbf16>, vector<8x4xf32> -> vector<8x4xf32>
    %55 = vector.extract_strided_slice %7 {offsets = [0, 8], sizes = [8, 4], strides = [1, 1]} : vector<8x32xbf16> to vector<8x4xbf16>
    %56 = vector.extract_strided_slice %8 {offsets = [0, 8], sizes = [8, 4], strides = [1, 1]} : vector<8x64xbf16> to vector<8x4xbf16>
    %57 = vector.extract_strided_slice %8 {offsets = [0, 40], sizes = [8, 4], strides = [1, 1]} : vector<8x64xbf16> to vector<8x4xbf16>
    %cst_24 = arith.constant dense<0.000000e+00> : vector<8x8xf32>
    %58 = tpu.matmul %55, %56, %cst_24 {dimension_numbers = #tpu.dot_dimension_numbers<[1], [1], [0], [0], [0, 0, 1, 0], [], []>} : vector<8x4xbf16>, vector<8x4xbf16>, vector<8x8xf32> -> vector<8x8xf32>
    %cst_25 = arith.constant dense<0xFF800000> : vector<8xf32>
    %59 = vector.multi_reduction <maximumf>, %58, %cst_25 [1] : vector<8x8xf32> to vector<8xf32>
    %60 = vector.shape_cast %59 : vector<8xf32> to vector<8x1xf32>
    %61 = vector.broadcast %60 : vector<8x1xf32> to vector<8x8xf32>
    %62 = arith.subf %58, %61 : vector<8x8xf32>
    %63 = math.exp %62 : vector<8x8xf32>
    %cst_26 = arith.constant dense<0.000000e+00> : vector<8xf32>
    %64 = vector.multi_reduction <add>, %63, %cst_26 [1] : vector<8x8xf32> to vector<8xf32>
    %65 = vector.shape_cast %64 : vector<8xf32> to vector<8x1xf32>
    %66 = tpu.reciprocal %65 {approx = true} : vector<8x1xf32> -> vector<8x1xf32>
    %67 = arith.mulf %65, %66 : vector<8x1xf32>
    %cst_27 = arith.constant 2.000000e+00 : f32
    %68 = vector.broadcast %cst_27 : f32 to vector<8x1xf32>
    %69 = arith.subf %68, %67 : vector<8x1xf32>
    %70 = arith.mulf %66, %69 : vector<8x1xf32>
    %71 = vector.broadcast %70 : vector<8x1xf32> to vector<8x8xf32>
    %72 = arith.mulf %63, %71 : vector<8x8xf32>
    %c0_28 = arith.constant 0 : index
    %c2 = arith.constant 2 : index
    %c0_29 = arith.constant 0 : index
    %c0_30 = arith.constant 0 : index
    %73 = vector.load %arg7[%c0_28, %c2, %c0_29, %c0_30] : memref<1x8x8x8xf32, #tpu.memory_space<vmem>>, vector<1x1x8x8xf32>
    %74 = vector.shape_cast %73 : vector<1x1x8x8xf32> to vector<8x8xf32>
    %75 = vector.shape_cast %72 : vector<8x8xf32> to vector<1x1x8x8xf32>
    tpu.vector_store %arg7[%c0_28, %c2, %c0_29, %c0_30], %75 {strides = array<i32>} : memref<1x8x8x8xf32, #tpu.memory_space<vmem>>, vector<1x1x8x8xf32>,
    %76 = arith.truncf %72 : vector<8x8xf32> to vector<8x8xbf16>
    %cst_31 = arith.constant dense<0.000000e+00> : vector<8x4xf32>
    %77 = tpu.matmul %76, %57, %cst_31 {dimension_numbers = #tpu.dot_dimension_numbers<[1], [0], [0], [1], [0, 0, 1, 1], [], []>} : vector<8x8xbf16>, vector<8x4xbf16>, vector<8x4xf32> -> vector<8x4xf32>
    %78 = vector.extract_strided_slice %7 {offsets = [0, 12], sizes = [8, 4], strides = [1, 1]} : vector<8x32xbf16> to vector<8x4xbf16>
    %79 = vector.extract_strided_slice %8 {offsets = [0, 12], sizes = [8, 4], strides = [1, 1]} : vector<8x64xbf16> to vector<8x4xbf16>
    %80 = vector.extract_strided_slice %8 {offsets = [0, 44], sizes = [8, 4], strides = [1, 1]} : vector<8x64xbf16> to vector<8x4xbf16>
    %cst_32 = arith.constant dense<0.000000e+00> : vector<8x8xf32>
    %81 = tpu.matmul %78, %79, %cst_32 {dimension_numbers = #tpu.dot_dimension_numbers<[1], [1], [0], [0], [0, 0, 1, 0], [], []>} : vector<8x4xbf16>, vector<8x4xbf16>, vector<8x8xf32> -> vector<8x8xf32>
    %cst_33 = arith.constant dense<0xFF800000> : vector<8xf32>
    %82 = vector.multi_reduction <maximumf>, %81, %cst_33 [1] : vector<8x8xf32> to vector<8xf32>
    %83 = vector.shape_cast %82 : vector<8xf32> to vector<8x1xf32>
    %84 = vector.broadcast %83 : vector<8x1xf32> to vector<8x8xf32>
    %85 = arith.subf %81, %84 : vector<8x8xf32>
    %86 = math.exp %85 : vector<8x8xf32>
    %cst_34 = arith.constant dense<0.000000e+00> : vector<8xf32>
    %87 = vector.multi_reduction <add>, %86, %cst_34 [1] : vector<8x8xf32> to vector<8xf32>
    %88 = vector.shape_cast %87 : vector<8xf32> to vector<8x1xf32>
    %89 = tpu.reciprocal %88 {approx = true} : vector<8x1xf32> -> vector<8x1xf32>
    %90 = arith.mulf %88, %89 : vector<8x1xf32>
    %cst_35 = arith.constant 2.000000e+00 : f32
    %91 = vector.broadcast %cst_35 : f32 to vector<8x1xf32>
    %92 = arith.subf %91, %90 : vector<8x1xf32>
    %93 = arith.mulf %89, %92 : vector<8x1xf32>
    %94 = vector.broadcast %93 : vector<8x1xf32> to vector<8x8xf32>
    %95 = arith.mulf %86, %94 : vector<8x8xf32>
    %c0_36 = arith.constant 0 : index
    %c3 = arith.constant 3 : index
    %c0_37 = arith.constant 0 : index
    %c0_38 = arith.constant 0 : index
    %96 = vector.load %arg7[%c0_36, %c3, %c0_37, %c0_38] : memref<1x8x8x8xf32, #tpu.memory_space<vmem>>, vector<1x1x8x8xf32>
    %97 = vector.shape_cast %96 : vector<1x1x8x8xf32> to vector<8x8xf32>
    %98 = vector.shape_cast %95 : vector<8x8xf32> to vector<1x1x8x8xf32>
    tpu.vector_store %arg7[%c0_36, %c3, %c0_37, %c0_38], %98 {strides = array<i32>} : memref<1x8x8x8xf32, #tpu.memory_space<vmem>>, vector<1x1x8x8xf32>,
    %99 = arith.truncf %95 : vector<8x8xf32> to vector<8x8xbf16>
    %cst_39 = arith.constant dense<0.000000e+00> : vector<8x4xf32>
    %100 = tpu.matmul %99, %80, %cst_39 {dimension_numbers = #tpu.dot_dimension_numbers<[1], [0], [0], [1], [0, 0, 1, 1], [], []>} : vector<8x8xbf16>, vector<8x4xbf16>, vector<8x4xf32> -> vector<8x4xf32>
    %101 = vector.extract_strided_slice %7 {offsets = [0, 16], sizes = [8, 4], strides = [1, 1]} : vector<8x32xbf16> to vector<8x4xbf16>
    %102 = vector.extract_strided_slice %8 {offsets = [0, 16], sizes = [8, 4], strides = [1, 1]} : vector<8x64xbf16> to vector<8x4xbf16>
    %103 = vector.extract_strided_slice %8 {offsets = [0, 48], sizes = [8, 4], strides = [1, 1]} : vector<8x64xbf16> to vector<8x4xbf16>
    %cst_40 = arith.constant dense<0.000000e+00> : vector<8x8xf32>
    %104 = tpu.matmul %101, %102, %cst_40 {dimension_numbers = #tpu.dot_dimension_numbers<[1], [1], [0], [0], [0, 0, 1, 0], [], []>} : vector<8x4xbf16>, vector<8x4xbf16>, vector<8x8xf32> -> vector<8x8xf32>
    %cst_41 = arith.constant dense<0xFF800000> : vector<8xf32>
    %105 = vector.multi_reduction <maximumf>, %104, %cst_41 [1] : vector<8x8xf32> to vector<8xf32>
    %106 = vector.shape_cast %105 : vector<8xf32> to vector<8x1xf32>
    %107 = vector.broadcast %106 : vector<8x1xf32> to vector<8x8xf32>
    %108 = arith.subf %104, %107 : vector<8x8xf32>
    %109 = math.exp %108 : vector<8x8xf32>
    %cst_42 = arith.constant dense<0.000000e+00> : vector<8xf32>
    %110 = vector.multi_reduction <add>, %109, %cst_42 [1] : vector<8x8xf32> to vector<8xf32>
    %111 = vector.shape_cast %110 : vector<8xf32> to vector<8x1xf32>
    %112 = tpu.reciprocal %111 {approx = true} : vector<8x1xf32> -> vector<8x1xf32>
    %113 = arith.mulf %111, %112 : vector<8x1xf32>
    %cst_43 = arith.constant 2.000000e+00 : f32
    %114 = vector.broadcast %cst_43 : f32 to vector<8x1xf32>
    %115 = arith.subf %114, %113 : vector<8x1xf32>
    %116 = arith.mulf %112, %115 : vector<8x1xf32>
    %117 = vector.broadcast %116 : vector<8x1xf32> to vector<8x8xf32>
    %118 = arith.mulf %109, %117 : vector<8x8xf32>
    %c0_44 = arith.constant 0 : index
    %c4 = arith.constant 4 : index
    %c0_45 = arith.constant 0 : index
    %c0_46 = arith.constant 0 : index
    %119 = vector.load %arg7[%c0_44, %c4, %c0_45, %c0_46] : memref<1x8x8x8xf32, #tpu.memory_space<vmem>>, vector<1x1x8x8xf32>
    %120 = vector.shape_cast %119 : vector<1x1x8x8xf32> to vector<8x8xf32>
    %121 = vector.shape_cast %118 : vector<8x8xf32> to vector<1x1x8x8xf32>
    tpu.vector_store %arg7[%c0_44, %c4, %c0_45, %c0_46], %121 {strides = array<i32>} : memref<1x8x8x8xf32, #tpu.memory_space<vmem>>, vector<1x1x8x8xf32>,
    %122 = arith.truncf %118 : vector<8x8xf32> to vector<8x8xbf16>
    %cst_47 = arith.constant dense<0.000000e+00> : vector<8x4xf32>
    %123 = tpu.matmul %122, %103, %cst_47 {dimension_numbers = #tpu.dot_dimension_numbers<[1], [0], [0], [1], [0, 0, 1, 1], [], []>} : vector<8x8xbf16>, vector<8x4xbf16>, vector<8x4xf32> -> vector<8x4xf32>
    %124 = vector.extract_strided_slice %7 {offsets = [0, 20], sizes = [8, 4], strides = [1, 1]} : vector<8x32xbf16> to vector<8x4xbf16>
    %125 = vector.extract_strided_slice %8 {offsets = [0, 20], sizes = [8, 4], strides = [1, 1]} : vector<8x64xbf16> to vector<8x4xbf16>
    %126 = vector.extract_strided_slice %8 {offsets = [0, 52], sizes = [8, 4], strides = [1, 1]} : vector<8x64xbf16> to vector<8x4xbf16>
    %cst_48 = arith.constant dense<0.000000e+00> : vector<8x8xf32>
    %127 = tpu.matmul %124, %125, %cst_48 {dimension_numbers = #tpu.dot_dimension_numbers<[1], [1], [0], [0], [0, 0, 1, 0], [], []>} : vector<8x4xbf16>, vector<8x4xbf16>, vector<8x8xf32> -> vector<8x8xf32>
    %cst_49 = arith.constant dense<0xFF800000> : vector<8xf32>
    %128 = vector.multi_reduction <maximumf>, %127, %cst_49 [1] : vector<8x8xf32> to vector<8xf32>
    %129 = vector.shape_cast %128 : vector<8xf32> to vector<8x1xf32>
    %130 = vector.broadcast %129 : vector<8x1xf32> to vector<8x8xf32>
    %131 = arith.subf %127, %130 : vector<8x8xf32>
    %132 = math.exp %131 : vector<8x8xf32>
    %cst_50 = arith.constant dense<0.000000e+00> : vector<8xf32>
    %133 = vector.multi_reduction <add>, %132, %cst_50 [1] : vector<8x8xf32> to vector<8xf32>
    %134 = vector.shape_cast %133 : vector<8xf32> to vector<8x1xf32>
    %135 = tpu.reciprocal %134 {approx = true} : vector<8x1xf32> -> vector<8x1xf32>
    %136 = arith.mulf %134, %135 : vector<8x1xf32>
    %cst_51 = arith.constant 2.000000e+00 : f32
    %137 = vector.broadcast %cst_51 : f32 to vector<8x1xf32>
    %138 = arith.subf %137, %136 : vector<8x1xf32>
    %139 = arith.mulf %135, %138 : vector<8x1xf32>
    %140 = vector.broadcast %139 : vector<8x1xf32> to vector<8x8xf32>
    %141 = arith.mulf %132, %140 : vector<8x8xf32>
    %c0_52 = arith.constant 0 : index
    %c5 = arith.constant 5 : index
    %c0_53 = arith.constant 0 : index
    %c0_54 = arith.constant 0 : index
    %142 = vector.load %arg7[%c0_52, %c5, %c0_53, %c0_54] : memref<1x8x8x8xf32, #tpu.memory_space<vmem>>, vector<1x1x8x8xf32>
    %143 = vector.shape_cast %142 : vector<1x1x8x8xf32> to vector<8x8xf32>
    %144 = vector.shape_cast %141 : vector<8x8xf32> to vector<1x1x8x8xf32>
    tpu.vector_store %arg7[%c0_52, %c5, %c0_53, %c0_54], %144 {strides = array<i32>} : memref<1x8x8x8xf32, #tpu.memory_space<vmem>>, vector<1x1x8x8xf32>,
    %145 = arith.truncf %141 : vector<8x8xf32> to vector<8x8xbf16>
    %cst_55 = arith.constant dense<0.000000e+00> : vector<8x4xf32>
    %146 = tpu.matmul %145, %126, %cst_55 {dimension_numbers = #tpu.dot_dimension_numbers<[1], [0], [0], [1], [0, 0, 1, 1], [], []>} : vector<8x8xbf16>, vector<8x4xbf16>, vector<8x4xf32> -> vector<8x4xf32>
    %147 = vector.extract_strided_slice %7 {offsets = [0, 24], sizes = [8, 4], strides = [1, 1]} : vector<8x32xbf16> to vector<8x4xbf16>
    %148 = vector.extract_strided_slice %8 {offsets = [0, 24], sizes = [8, 4], strides = [1, 1]} : vector<8x64xbf16> to vector<8x4xbf16>
    %149 = vector.extract_strided_slice %8 {offsets = [0, 56], sizes = [8, 4], strides = [1, 1]} : vector<8x64xbf16> to vector<8x4xbf16>
    %cst_56 = arith.constant dense<0.000000e+00> : vector<8x8xf32>
    %150 = tpu.matmul %147, %148, %cst_56 {dimension_numbers = #tpu.dot_dimension_numbers<[1], [1], [0], [0], [0, 0, 1, 0], [], []>} : vector<8x4xbf16>, vector<8x4xbf16>, vector<8x8xf32> -> vector<8x8xf32>
    %cst_57 = arith.constant dense<0xFF800000> : vector<8xf32>
    %151 = vector.multi_reduction <maximumf>, %150, %cst_57 [1] : vector<8x8xf32> to vector<8xf32>
    %152 = vector.shape_cast %151 : vector<8xf32> to vector<8x1xf32>
    %153 = vector.broadcast %152 : vector<8x1xf32> to vector<8x8xf32>
    %154 = arith.subf %150, %153 : vector<8x8xf32>
    %155 = math.exp %154 : vector<8x8xf32>
    %cst_58 = arith.constant dense<0.000000e+00> : vector<8xf32>
    %156 = vector.multi_reduction <add>, %155, %cst_58 [1] : vector<8x8xf32> to vector<8xf32>
    %157 = vector.shape_cast %156 : vector<8xf32> to vector<8x1xf32>
    %158 = tpu.reciprocal %157 {approx = true} : vector<8x1xf32> -> vector<8x1xf32>
    %159 = arith.mulf %157, %158 : vector<8x1xf32>
    %cst_59 = arith.constant 2.000000e+00 : f32
    %160 = vector.broadcast %cst_59 : f32 to vector<8x1xf32>
    %161 = arith.subf %160, %159 : vector<8x1xf32>
    %162 = arith.mulf %158, %161 : vector<8x1xf32>
    %163 = vector.broadcast %162 : vector<8x1xf32> to vector<8x8xf32>
    %164 = arith.mulf %155, %163 : vector<8x8xf32>
    %c0_60 = arith.constant 0 : index
    %c6 = arith.constant 6 : index
    %c0_61 = arith.constant 0 : index
    %c0_62 = arith.constant 0 : index
    %165 = vector.load %arg7[%c0_60, %c6, %c0_61, %c0_62] : memref<1x8x8x8xf32, #tpu.memory_space<vmem>>, vector<1x1x8x8xf32>
    %166 = vector.shape_cast %165 : vector<1x1x8x8xf32> to vector<8x8xf32>
    %167 = vector.shape_cast %164 : vector<8x8xf32> to vector<1x1x8x8xf32>
    tpu.vector_store %arg7[%c0_60, %c6, %c0_61, %c0_62], %167 {strides = array<i32>} : memref<1x8x8x8xf32, #tpu.memory_space<vmem>>, vector<1x1x8x8xf32>,
    %168 = arith.truncf %164 : vector<8x8xf32> to vector<8x8xbf16>
    %cst_63 = arith.constant dense<0.000000e+00> : vector<8x4xf32>
    %169 = tpu.matmul %168, %149, %cst_63 {dimension_numbers = #tpu.dot_dimension_numbers<[1], [0], [0], [1], [0, 0, 1, 1], [], []>} : vector<8x8xbf16>, vector<8x4xbf16>, vector<8x4xf32> -> vector<8x4xf32>
    %170 = vector.extract_strided_slice %7 {offsets = [0, 28], sizes = [8, 4], strides = [1, 1]} : vector<8x32xbf16> to vector<8x4xbf16>
    %171 = vector.extract_strided_slice %8 {offsets = [0, 28], sizes = [8, 4], strides = [1, 1]} : vector<8x64xbf16> to vector<8x4xbf16>
    %172 = vector.extract_strided_slice %8 {offsets = [0, 60], sizes = [8, 4], strides = [1, 1]} : vector<8x64xbf16> to vector<8x4xbf16>
    %cst_64 = arith.constant dense<0.000000e+00> : vector<8x8xf32>
    %173 = tpu.matmul %170, %171, %cst_64 {dimension_numbers = #tpu.dot_dimension_numbers<[1], [1], [0], [0], [0, 0, 1, 0], [], []>} : vector<8x4xbf16>, vector<8x4xbf16>, vector<8x8xf32> -> vector<8x8xf32>
    %cst_65 = arith.constant dense<0xFF800000> : vector<8xf32>
    %174 = vector.multi_reduction <maximumf>, %173, %cst_65 [1] : vector<8x8xf32> to vector<8xf32>
    %175 = vector.shape_cast %174 : vector<8xf32> to vector<8x1xf32>
    %176 = vector.broadcast %175 : vector<8x1xf32> to vector<8x8xf32>
    %177 = arith.subf %173, %176 : vector<8x8xf32>
    %178 = math.exp %177 : vector<8x8xf32>
    %cst_66 = arith.constant dense<0.000000e+00> : vector<8xf32>
    %179 = vector.multi_reduction <add>, %178, %cst_66 [1] : vector<8x8xf32> to vector<8xf32>
    %180 = vector.shape_cast %179 : vector<8xf32> to vector<8x1xf32>
    %181 = tpu.reciprocal %180 {approx = true} : vector<8x1xf32> -> vector<8x1xf32>
    %182 = arith.mulf %180, %181 : vector<8x1xf32>
    %cst_67 = arith.constant 2.000000e+00 : f32
    %183 = vector.broadcast %cst_67 : f32 to vector<8x1xf32>
    %184 = arith.subf %183, %182 : vector<8x1xf32>
    %185 = arith.mulf %181, %184 : vector<8x1xf32>
    %186 = vector.broadcast %185 : vector<8x1xf32> to vector<8x8xf32>
    %187 = arith.mulf %178, %186 : vector<8x8xf32>
    %c0_68 = arith.constant 0 : index
    %c7 = arith.constant 7 : index
    %c0_69 = arith.constant 0 : index
    %c0_70 = arith.constant 0 : index
    %188 = vector.load %arg7[%c0_68, %c7, %c0_69, %c0_70] : memref<1x8x8x8xf32, #tpu.memory_space<vmem>>, vector<1x1x8x8xf32>
    %189 = vector.shape_cast %188 : vector<1x1x8x8xf32> to vector<8x8xf32>
    %190 = vector.shape_cast %187 : vector<8x8xf32> to vector<1x1x8x8xf32>
    tpu.vector_store %arg7[%c0_68, %c7, %c0_69, %c0_70], %190 {strides = array<i32>} : memref<1x8x8x8xf32, #tpu.memory_space<vmem>>, vector<1x1x8x8xf32>,
    %191 = arith.truncf %187 : vector<8x8xf32> to vector<8x8xbf16>
    %cst_71 = arith.constant dense<0.000000e+00> : vector<8x4xf32>
    %192 = tpu.matmul %191, %172, %cst_71 {dimension_numbers = #tpu.dot_dimension_numbers<[1], [0], [0], [1], [0, 0, 1, 1], [], []>} : vector<8x8xbf16>, vector<8x4xbf16>, vector<8x4xf32> -> vector<8x4xf32>
    %193 = tpu.concatenate %31, %54, %77, %100, %123, %146, %169, %192 in 1 : vector<8x4xf32>, vector<8x4xf32>, vector<8x4xf32>, vector<8x4xf32>, vector<8x4xf32>, vector<8x4xf32>, vector<8x4xf32>, vector<8x4xf32> -> vector<8x32xf32>
    %c0_72 = arith.constant 0 : index
    %c0_73 = arith.constant 0 : index
    %c0_74 = arith.constant 0 : index
    %194 = vector.load %arg6[%c0_72, %c0_73, %c0_74] : memref<1x8x32xf32, #tpu.memory_space<vmem>>, vector<1x8x32xf32>
    %195 = vector.shape_cast %194 : vector<1x8x32xf32> to vector<8x32xf32>
    %196 = vector.shape_cast %193 : vector<8x32xf32> to vector<1x8x32xf32>
    tpu.vector_store %arg6[%c0_72, %c0_73, %c0_74], %196 {strides = array<i32>} : memref<1x8x32xf32, #tpu.memory_space<vmem>>, vector<1x8x32xf32>,
    return
  }
  func.func @transform_0(%arg0: i32, %arg1: i32) -> (i32, i32, i32) {
    %c0_i32 = arith.constant 0 : i32
    %c0_i32_0 = arith.constant 0 : i32
    return %arg0, %arg1, %c0_i32 : i32, i32, i32
  }
  func.func @transform_1(%arg0: i32, %arg1: i32) -> (i32, i32, i32) {
    %c0_i32 = arith.constant 0 : i32
    %c0_i32_0 = arith.constant 0 : i32
    %c0_i32_1 = arith.constant 0 : i32
    return %arg0, %c0_i32, %c0_i32_0 : i32, i32, i32
  }
  func.func @transform_2(%arg0: i32, %arg1: i32) -> (i32, i32) {
    %c0_i32 = arith.constant 0 : i32
    %c0_i32_0 = arith.constant 0 : i32
    %c0_i32_1 = arith.constant 0 : i32
    return %c0_i32, %c0_i32_0 : i32, i32
  }
  func.func @transform_3(%arg0: i32, %arg1: i32) -> (i32, i32) {
    %c0_i32 = arith.constant 0 : i32
    %c0_i32_0 = arith.constant 0 : i32
    %c0_i32_1 = arith.constant 0 : i32
    return %c0_i32, %c0_i32_0 : i32, i32
  }
  func.func @transform_4(%arg0: i32, %arg1: i32) -> (i32, i32, i32) {
    %c0_i32 = arith.constant 0 : i32
    %c0_i32_0 = arith.constant 0 : i32
    return %arg0, %arg1, %c0_i32 : i32, i32, i32
  }
  func.func @transform_5(%arg0: i32, %arg1: i32) -> (i32, i32, i32, i32) {
    %c0_i32 = arith.constant 0 : i32
    %c0_i32_0 = arith.constant 0 : i32
    %c0_i32_1 = arith.constant 0 : i32
    return %arg0, %c0_i32, %arg1, %c0_i32_0 : i32, i32, i32, i32
  }
}

</mosaic_0001>

<llo_original>
// kernel: tpu_custom_call.1
$region0: #{tpu_custom_call.1}
  #allocation0 [shape = 'u32[]', space=smem, size = 0x4, offset = 0x4, fixed_abs, tag = 'smem constant byte address 0x4 - core index']
  #allocation1 [shape = 'u32[144,128]{1,0:T(1,128)}', space=vmem, size = 0x12000, scoped, tag = 'internal scratch']
  #allocation2 [shape = 'bf16[8,64]{1,0:T(8,128)(2,1)}', space=vmem, size = 0x800, scoped, tag = 'scratch operand']
  %s0 = inlined_call_operand.hbm [shape: bf16[2,8,32], index: 0, kind: input, shape index: {}]
  %s1 = inlined_call_operand.hbm [shape: bf16[2,8,16], index: 1, kind: input, shape index: {}]
  %s2 = inlined_call_operand.hbm [shape: bf16[32,32], index: 2, kind: input, shape index: {}]
  %s3 = inlined_call_operand.vmem [shape: bf16[16,64], index: 3, kind: input, shape index: {}]
  %s4 = inlined_call_operand.hbm [shape: f32[2,8,32], index: 4, kind: output, shape index: {0}]
  %s5 = inlined_call_operand.hbm [shape: f32[2,8,8,8], index: 5, kind: output, shape index: {1}]
  %6 = xla_tuple %s4, %s5
  %s7 = sld [smem:[#allocation0]]
  $region73: #{tpu_custom_call.1} parent=0
    _
  %s9 = ssub.s32 1, %s7
  %s10 = scalar_select 0, %s9, %s7
  $region1: #{tpu_custom_call.1} parent=0
    #allocation3 [shape = 'u8[4096]{0}', space=vmem, size = 0x1000, scoped, tag = 'input window, operand 0']
    #allocation4 [shape = 's32[2]{0}', space=sflag, size = 0x8, scoped, tag = 'scoped memory for tpu_custom_call.1']
    #allocation5 [shape = 's32[2]{0}', space=sflag, size = 0x8, scoped, tag = 'scoped memory for tpu_custom_call.1']
    #allocation6 [shape = 'u8[4096]{0}', space=vmem, size = 0x1000, scoped, tag = 'input window, operand 1']
    #allocation7 [shape = 's32[2]{0}', space=sflag, size = 0x8, scoped, tag = 'scoped memory for tpu_custom_call.1']
    #allocation8 [shape = 'u8[8192]{0}', space=vmem, size = 0x2000, scoped, tag = 'input window, operand 2, single buffered']
    #allocation9 [shape = 'u8[8192]{0}', space=vmem, size = 0x2000, scoped, tag = 'output window, operand 0']
    #allocation10 [shape = 'u8[65536]{0}', space=vmem, size = 0x10000, scoped, tag = 'output window, operand 1']
    #allocation11 [shape = 's32[2]{0}', space=sflag, size = 0x8, scoped, tag = 'scoped memory for tpu_custom_call.1']
    %11 = vsyncpa [#allocation4], 0
    %s12 = scalar_lea.sflag [#allocation4], 1
    %13 = vsyncpa %s12, 0
    %14 = vsyncpa [#allocation7], 0
    %s15 = scalar_lea.sflag [#allocation7], 1
    %16 = vsyncpa %s15, 0
    %17 = vsyncpa [#allocation5], 0
    %s18 = scalar_lea.sflag [#allocation5], 1
    %19 = vsyncpa %s18, 0
    %20 = vsyncpa [#allocation11], 0
    %s21 = scalar_lea.sflag [#allocation11], 1
    %22 = vsyncpa %s21, 0
    loop: start=0, step=1, limit=4
    $region2: #{tpu_custom_call.1} parent=1 // loop_pre_header
      _
    $region3: #{tpu_custom_call.1} parent=1 // loop_header
      %s24 = sphi 0, %s28
      %p25 = scmp.ge.s32.totalorder %s24, 4
      %s31 = sphi 0, %s43
      %s32 = sphi 0, %s39
      %s33 = sphi 0, %s31
      %s34 = sphi 0, %s32
      %s35 = sphi 0, %s33
      %s36 = sphi 0, %s34
      %s48 = sphi 0, %s50
      %s51 = sphi 0, %s48
      %s52 = sphi 0, %s51
      %s68 = sphi 0, %s52
      %s74 = sphi 0, %s76
      %s77 = sphi 0, %s74
      %s78 = sphi 0, %s77
      %s94 = sphi 0, %s78
      %s98 = sphi 0, %s98
      %s100 = sphi 0, %s98
      %s101 = sphi 0, %s100
      %s115 = sphi 0, %s101
      %s119 = sphi 0, %s119
      %s121 = sphi 0, %s119
      %s122 = sphi 0, %s121
      %s136 = sphi 0, %s122
      %s144 = sphi 0, %s146
      %s147 = sphi 0, %s144
      %s148 = sphi 0, %s147
      %s164 = sphi 0, %s148
      %s172 = sphi 0, %s174
      %s175 = sphi 0, %s172
      %s176 = sphi 0, %s175
      %s192 = sphi 0, %s176
    $region4: #{tpu_custom_call.1} parent=1 // loop_header_branch
      %27 = sbr.rel (%p25) target = $region8
    $region5: #{tpu_custom_call.1} parent=1 // loop_body
      %s29 = ssub.s32 %s24, 1
      %s30 = ssub.s32 %s24, 2
      %s37 = sadd.s32 1, %s32
      %p38 = scmp.ge.s32.totalorder %s37, 1
      %s39 = scalar_select %p38, 0, %s37
      %s40 = sadd.s32 1, %s31
      %s41 = scalar_select %p38, %s40, %s31
      %p42 = scmp.ge.s32.totalorder %s41, 2
      %s43 = scalar_select %p42, 0, %s41
      %s44 = ssub.s32 %s31, %s43
      %s45 = ssub.s32 %s32, %s39
      %s46 = sor.u32 %s44, %s45
      %p47 = scmp.eq.s32.totalorder %s46, 0
      %s49 = sadd.s32 %s48, 1
      %s50 = scalar_select %p47, %s48, %s49
      %p53 = pneg %p47
      %p54 = scmp.eq.s32.totalorder %s24, 1
      %p55 = por %p53, %p54
      %p56 = scmp.ne.s32.totalorder %s48, %s51
      %p57 = scmp.eq.s32.totalorder %s24, 0
      %p58 = por %p56, %p57
      %p59 = scmp.ne.s32.totalorder %s48, %s51
      %p60 = scmp.eq.s32.totalorder %s29, 1
      %p61 = por %p59, %p60
      %p62 = scmp.ne.s32.totalorder %s51, %s52
      %p63 = scmp.eq.s32.totalorder %s29, 0
      %p64 = por %p62, %p63
      %p65 = scmp.ne.s32.totalorder %s51, %s52
      %p66 = scmp.eq.s32.totalorder %s30, 1
      %p67 = por %p65, %p66
      %p69 = scmp.ne.s32.totalorder %s52, %s68
      %p70 = scmp.eq.s32.totalorder %s30, 0
      %p71 = por %p69, %p70
      %s72 = ssub.s32 %s31, %s43
      %p73 = scmp.eq.s32.totalorder %s72, 0
      %s75 = sadd.s32 %s74, 1
      %s76 = scalar_select %p73, %s74, %s75
      %p79 = pneg %p73
      %p80 = scmp.eq.s32.totalorder %s24, 1
      %p81 = por %p79, %p80
      %p82 = scmp.ne.s32.totalorder %s74, %s77
      %p83 = scmp.eq.s32.totalorder %s24, 0
      %p84 = por %p82, %p83
      %p85 = scmp.ne.s32.totalorder %s74, %s77
      %p86 = scmp.eq.s32.totalorder %s29, 1
      %p87 = por %p85, %p86
      %p88 = scmp.ne.s32.totalorder %s77, %s78
      %p89 = scmp.eq.s32.totalorder %s29, 0
      %p90 = por %p88, %p89
      %p91 = scmp.ne.s32.totalorder %s77, %s78
      %p92 = scmp.eq.s32.totalorder %s30, 1
      %p93 = por %p91, %p92
      %p95 = scmp.ne.s32.totalorder %s78, %s94
      %p96 = scmp.eq.s32.totalorder %s30, 0
      %p97 = por %p95, %p96
      %s99 = sadd.s32 %s98, 1
      %p102 = scmp.eq.s32.totalorder %s24, 1
      %p103 = scmp.ne.s32.totalorder %s98, %s100
      %p104 = scmp.eq.s32.totalorder %s24, 0
      %p105 = por %p103, %p104
      %p106 = scmp.ne.s32.totalorder %s98, %s100
      %p107 = scmp.eq.s32.totalorder %s29, 1
      %p108 = por %p106, %p107
      %p109 = scmp.ne.s32.totalorder %s100, %s101
      %p110 = scmp.eq.s32.totalorder %s29, 0
      %p111 = por %p109, %p110
      %p112 = scmp.ne.s32.totalorder %s100, %s101
      %p113 = scmp.eq.s32.totalorder %s30, 1
      %p114 = por %p112, %p113
      %p116 = scmp.ne.s32.totalorder %s101, %s115
      %p117 = scmp.eq.s32.totalorder %s30, 0
      %p118 = por %p116, %p117
      %s120 = sadd.s32 %s119, 1
      %p123 = scmp.eq.s32.totalorder %s24, 1
      %p124 = scmp.ne.s32.totalorder %s119, %s121
      %p125 = scmp.eq.s32.totalorder %s24, 0
      %p126 = por %p124, %p125
      %p127 = scmp.ne.s32.totalorder %s119, %s121
      %p128 = scmp.eq.s32.totalorder %s29, 1
      %p129 = por %p127, %p128
      %p130 = scmp.ne.s32.totalorder %s121, %s122
      %p131 = scmp.eq.s32.totalorder %s29, 0
      %p132 = por %p130, %p131
      %p133 = scmp.ne.s32.totalorder %s121, %s122
      %p134 = scmp.eq.s32.totalorder %s30, 1
      %p135 = por %p133, %p134
      %p137 = scmp.ne.s32.totalorder %s122, %s136
      %p138 = scmp.eq.s32.totalorder %s30, 0
      %p139 = por %p137, %p138
      %s140 = ssub.s32 %s31, %s43
      %s141 = ssub.s32 %s32, %s39
      %s142 = sor.u32 %s140, %s141
      %p143 = scmp.eq.s32.totalorder %s142, 0
      %s145 = sadd.s32 %s144, 1
      %s146 = scalar_select %p143, %s144, %s145
      %p149 = pneg %p143
      %p150 = scmp.eq.s32.totalorder %s24, 1
      %p151 = por %p149, %p150
      %p152 = scmp.ne.s32.totalorder %s144, %s147
      %p153 = scmp.eq.s32.totalorder %s24, 0
      %p154 = por %p152, %p153
      %p155 = scmp.ne.s32.totalorder %s144, %s147
      %p156 = scmp.eq.s32.totalorder %s29, 1
      %p157 = por %p155, %p156
      %p158 = scmp.ne.s32.totalorder %s147, %s148
      %p159 = scmp.eq.s32.totalorder %s29, 0
      %p160 = por %p158, %p159
      %p161 = scmp.ne.s32.totalorder %s147, %s148
      %p162 = scmp.eq.s32.totalorder %s30, 1
      %p163 = por %p161, %p162
      %p165 = scmp.ne.s32.totalorder %s148, %s164
      %p166 = scmp.eq.s32.totalorder %s30, 0
      %p167 = por %p165, %p166
      %s168 = ssub.s32 %s31, %s43
      %s169 = ssub.s32 %s32, %s39
      %s170 = sor.u32 %s168, %s169
      %p171 = scmp.eq.s32.totalorder %s170, 0
      %s173 = sadd.s32 %s172, 1
      %s174 = scalar_select %p171, %s172, %s173
      %p177 = pneg %p171
      %p178 = scmp.eq.s32.totalorder %s24, 1
      %p179 = por %p177, %p178
      %p180 = scmp.ne.s32.totalorder %s172, %s175
      %p181 = scmp.eq.s32.totalorder %s24, 0
      %p182 = por %p180, %p181
      %p183 = scmp.ne.s32.totalorder %s172, %s175
      %p184 = scmp.eq.s32.totalorder %s29, 1
      %p185 = por %p183, %p184
      %p186 = scmp.ne.s32.totalorder %s175, %s176
      %p187 = scmp.eq.s32.totalorder %s29, 0
      %p188 = por %p186, %p187
      %p189 = scmp.ne.s32.totalorder %s175, %s176
      %p190 = scmp.eq.s32.totalorder %s30, 1
      %p191 = por %p189, %p190
      %p193 = scmp.ne.s32.totalorder %s176, %s192
      %p194 = scmp.eq.s32.totalorder %s30, 0
      %p195 = por %p193, %p194
      %p196 = scmp.le.s32.totalorder 1, %s24
      %p197 = scmp.lt.s32.totalorder %s24, 3
      %p198 = pnand %p196, %p197
      %p199 = pneg %p198
      // Predicated region
      $region9: #{tpu_custom_call.1} parent=5 // pred_check
        _
      $region10: #{tpu_custom_call.1} parent=5 // pred_check_branch
        %201 = sbr.rel (%p198) target = $region12
      $region11: #{tpu_custom_call.1} parent=5 // pred_region
        %s202 = ssub.s32 %s24, 1
        // Predicated region
        $region13: #{tpu_custom_call.1} parent=11 // pred_check
          %p203 = pneg %p111
        $region14: #{tpu_custom_call.1} parent=11 // pred_check_branch
          %205 = sbr.rel (%p203) target = $region16
        $region15: #{tpu_custom_call.1} parent=11 // pred_region
          %s207 = ssub.s32 256, 256
          %208 = vsyncadd [#allocation7], %s207
          %s209 = sshll.u32 [#allocation8], 4
          %s210 = int_to_ptr.vmem [resolvable:$true] %s209
          %215 = dma.hbm_to_vmem [thread:$0]  %s2, 256, %s210, [#allocation7], 64, 64, 4
        $region16: #{tpu_custom_call.1} parent=11 // pred_fallthru
          _
        // Predicated region
        $region17: #{tpu_custom_call.1} parent=11 // pred_check
          %p216 = pneg %p132
        $region18: #{tpu_custom_call.1} parent=11 // pred_check_branch
          %218 = sbr.rel (%p216) target = $region20
        $region19: #{tpu_custom_call.1} parent=11 // pred_region
          _
        $region20: #{tpu_custom_call.1} parent=11 // pred_fallthru
          _
      $region12: #{tpu_custom_call.1} parent=5 // pred_fallthru
        _
      %p219 = scmp.lt.s32.totalorder %s24, 2
      // Predicated region
      $region21: #{tpu_custom_call.1} parent=5 // pred_check
        %p220 = pneg %p219
      $region22: #{tpu_custom_call.1} parent=5 // pred_check_branch
        %222 = sbr.rel (%p220) target = $region24
      $region23: #{tpu_custom_call.1} parent=5 // pred_region
        // Predicated region
        $region25: #{tpu_custom_call.1} parent=23 // pred_check
          %p223 = pneg %p58
        $region26: #{tpu_custom_call.1} parent=23 // pred_check_branch
          %225 = sbr.rel (%p223) target = $region28
        $region27: #{tpu_custom_call.1} parent=23 // pred_region
          %s226 = sand.u32 %s48, 1
          %s227 = scalar_lea.sflag [#allocation4], %s226
          %s228 = sand.u32 %s48, 1
          %s229 = smul.addr %s228, 4
          %s230 = scalar_lea.vmem [#allocation3], %s229
          %s232 = ssub.s32 64, 64
          %233 = vsyncadd %s227, %s232
          %s234 = sadd.s32 %s32, %s31
          %s235 = smul.addr %s234, 64
          %s236 = scalar_lea.hbm %s0, %s235
          %s238 = sshll.u32 %s230, 4
          %s239 = int_to_ptr.vmem [resolvable:$true] %s238
          %241 = dma.hbm_to_vmem [thread:$0]  %s236, 64, %s239, %s227
        $region28: #{tpu_custom_call.1} parent=23 // pred_fallthru
          _
        // Predicated region
        $region29: #{tpu_custom_call.1} parent=23 // pred_check
          %p242 = pneg %p84
        $region30: #{tpu_custom_call.1} parent=23 // pred_check_branch
          %244 = sbr.rel (%p242) target = $region32
        $region31: #{tpu_custom_call.1} parent=23 // pred_region
          %s245 = sand.u32 %s24, 1
          %s246 = scalar_lea.sflag [#allocation7], %s245
          %s247 = sand.u32 %s74, 1
          %s248 = smul.addr %s247, 4
          %s249 = scalar_lea.vmem [#allocation6], %s248
          %s251 = ssub.s32 64, 64
          %252 = vsyncadd %s246, %s251
          %s253 = smul.addr %s31, 64
          %s254 = scalar_lea.hbm %s1, %s253
          %s256 = sshll.u32 %s249, 4
          %s257 = int_to_ptr.vmem [resolvable:$true] %s256
          %259 = dma.hbm_to_vmem [thread:$0]  %s254, 64, %s257, %s246
        $region32: #{tpu_custom_call.1} parent=23 // pred_fallthru
          _
      $region24: #{tpu_custom_call.1} parent=5 // pred_fallthru
        _
      %p260 = scmp.le.s32.totalorder 1, %s24
      %p261 = scmp.lt.s32.totalorder %s24, 3
      %p262 = pnand %p260, %p261
      %p263 = pneg %p262
      // Predicated region
      $region33: #{tpu_custom_call.1} parent=5 // pred_check
        _
      $region34: #{tpu_custom_call.1} parent=5 // pred_check_branch
        %265 = sbr.rel (%p262) target = $region36
      $region35: #{tpu_custom_call.1} parent=5 // pred_region
        %s266 = ssub.s32 %s24, 1
        %s267 = sand.u32 %s51, 1
        %s268 = scalar_lea.sflag [#allocation4], %s267
        %s269 = sand.u32 %s51, 1
        %s270 = smul.addr %s269, 4
        %s271 = scalar_lea.vmem [#allocation3], %s270
        // Predicated region
        $region37: #{tpu_custom_call.1} parent=35 // pred_check
          %p272 = pneg %p64
        $region38: #{tpu_custom_call.1} parent=35 // pred_check_branch
          %274 = sbr.rel (%p272) target = $region40
        $region39: #{tpu_custom_call.1} parent=35 // pred_region
          %275 = dma.done %s268, 64
        $region40: #{tpu_custom_call.1} parent=35 // pred_fallthru
          _
        %s276 = sand.u32 %s29, 1
        %s277 = scalar_lea.sflag [#allocation7], %s276
        %s278 = sand.u32 %s77, 1
        %s279 = smul.addr %s278, 4
        %s280 = scalar_lea.vmem [#allocation6], %s279
        // Predicated region
        $region41: #{tpu_custom_call.1} parent=35 // pred_check
          %p281 = pneg %p90
        $region42: #{tpu_custom_call.1} parent=35 // pred_check_branch
          %283 = sbr.rel (%p281) target = $region44
        $region43: #{tpu_custom_call.1} parent=35 // pred_region
          %284 = dma.done %s277, 64
        $region44: #{tpu_custom_call.1} parent=35 // pred_fallthru
          _
        // Predicated region
        $region45: #{tpu_custom_call.1} parent=35 // pred_check
          %p285 = pneg %p111
        $region46: #{tpu_custom_call.1} parent=35 // pred_check_branch
          %287 = sbr.rel (%p285) target = $region48
        $region47: #{tpu_custom_call.1} parent=35 // pred_region
          %288 = dma.done [#allocation7], 256
        $region48: #{tpu_custom_call.1} parent=35 // pred_fallthru
          _
        %s289 = sand.u32 %s51, 1
        %s290 = scalar_lea.sflag [#allocation4], %s289
        %s291 = sand.u32 %s51, 1
        %s292 = smul.addr %s291, 4
        %s293 = scalar_lea.vmem [#allocation3], %s292
        %p294 = pneg %p64
        %p295 = pneg %p61
        %s296 = sand.u32 %s29, 1
        %s297 = scalar_lea.sflag [#allocation7], %s296
        %s298 = sand.u32 %s77, 1
        %s299 = smul.addr %s298, 4
        %s300 = scalar_lea.vmem [#allocation6], %s299
        %p301 = pneg %p90
        %p302 = pneg %p87
        %p303 = pneg %p111
        %p304 = pneg %p108
        %p305 = pneg %p132
        %p306 = pneg %p129
        %p307 = pneg %p160
        %p308 = pneg %p157
        %s309 = sand.u32 %s147, 1
        %s310 = scalar_lea.sflag [#allocation5], %s309
        %s311 = sand.u32 %s147, 1
        %s312 = smul.addr %s311, 8
        %s313 = scalar_lea.vmem [#allocation9], %s312
        %p314 = pneg %p188
        %p315 = pneg %p185
        %s316 = sand.u32 %s175, 1
        %s317 = scalar_lea.sflag [#allocation11], %s316
        %s318 = sand.u32 %s175, 1
        %s319 = smul.addr %s318, 64
        %s320 = scalar_lea.vmem [#allocation10], %s319
        %p322 = scmp.eq.s32.totalorder %s34, 0
        // Predicated region
        $region49: #{tpu_custom_call.1} parent=35 // pred_check
          %p323 = pneg %p322
        $region50: #{tpu_custom_call.1} parent=35 // pred_check_branch
          %325 = sbr.rel (%p323) target = $region52
        $region51: #{tpu_custom_call.1} parent=35 // pred_region
          %v326 = vld [vmem:[%s280] sm:$0xf]
          %v327 = vld [vmem:[%s3] sm:$0xf]
          %v328 = vld [vmem:[%s3 + $0x4] sm:$0xf]
          %v331 = vunpack.c.l.b16 %v327
          %v332 = vunpack.c.l.b16 %v328
          %v333 = vpack.c.b16 %v332, %v331
          %vm335 = vcmask 130048
          %v337 = vsel %vm335, %v326, 0
          %339 = vmatprep.subr.bf16.mxu0 0
          %340 = vmatpush1.bf16.msra.mxu0 %v333
          %341 = vmatprep.subr.bf16.mxu0 0
          %342 = vmatpush1.bf16.msra.mxu0 0
          %343 = vmatprep.subr.bf16.mxu0 0
          %344 = vmatpush1.bf16.msra.mxu0 0
          %345 = vmatprep.subr.bf16.mxu0 0
          %346 = vmatpush1.bf16.msra.mxu0 0
          %347 = vmatprep.subr.bf16.mxu0 0
          %348 = vmatpush1.bf16.msra.mxu0 0
          %349 = vmatprep.subr.bf16.mxu0 0
          %350 = vmatpush1.bf16.msra.mxu0 0
          %351 = vmatprep.subr.bf16.mxu0 0
          %352 = vmatpush1.bf16.msra.mxu0 0
          %353 = vmatprep.subr.bf16.mxu0 0
          %354 = vmatpush1.bf16.msra.mxu0 0
          %355 = vmatprep.subr.bf16.mxu0 0
          %356 = vmatpush1.bf16.msra.mxu0 0
          %357 = vmatprep.subr.bf16.mxu0 0
          %358 = vmatpush1.bf16.msra.mxu0 0
          %359 = vmatprep.subr.bf16.mxu0 0
          %360 = vmatpush1.bf16.msra.mxu0 0
          %361 = vmatprep.subr.bf16.mxu0 0
          %362 = vmatpush1.bf16.msra.mxu0 0
          %363 = vmatprep.subr.bf16.mxu0 0
          %364 = vmatpush1.bf16.msra.mxu0 0
          %365 = vmatprep.subr.bf16.mxu0 0
          %366 = vmatpush1.bf16.msra.mxu0 0
          %367 = vmatprep.subr.bf16.mxu0 0
          %368 = vmatpush1.bf16.msra.mxu0 0
          %369 = vmatprep.subr.bf16.mxu0 0
          %370 = vmatpush1.bf16.msra.mxu0 0
          %371 = vmatprep.mubr.bf16.mxu0 0
          %372 = vmatmul.mubr.bf16.gmra.mrb[0].mxu0 %v337
          %v373 = vpop.f32.mrb[0].mxu0
          %v374 = vadd.f32 0.0, %v373
          %v375 = vpop.f32.mrb[0].mxu0
          %v376 = vpop.f32.mrb[0].mxu0
          %v377 = vpop.f32.mrb[0].mxu0
          %378 = vdwg.mxu0
          %v379 = vpack.c.bf16 %v374, %v374
          %vm380 = vcmask 519168
          %381 = vst.msk [vmem:[#allocation2] sm:$0xf] %vm380, %v379
        $region52: #{tpu_custom_call.1} parent=35 // pred_fallthru
          _
        %v382 = vld [vmem:[%s271] sm:$0xf]
        %v383 = vld [vmem:[#allocation8] sm:$0xf]
        %v384 = vld [vmem:[#allocation8 + $0x4] sm:$0xf]
        %v385 = vld [vmem:[#allocation8 + $0x8] sm:$0xf]
        %v386 = vld [vmem:[#allocation8 + $0xc] sm:$0xf]
        %v391 = vunpack.c.l.b16 %v383
        %v392 = vunpack.c.l.b16 %v384
        %v393 = vunpack.c.l.b16 %v385
        %v394 = vunpack.c.l.b16 %v386
        %v395 = vpack.c.b16 %v392, %v391
        %v396 = vpack.c.b16 %v394, %v393
        %vm399 = vcmask 261120
        %v401 = vsel %vm399, %v382, 0
        %403 = vmatprep.subr.bf16.mxu0 0
        %404 = vmatpush1.bf16.msra.mxu0 %v395
        %405 = vmatprep.subr.bf16.mxu0 0
        %406 = vmatpush1.bf16.msra.mxu0 %v396
        %407 = vmatprep.subr.bf16.mxu0 0
        %408 = vmatpush1.bf16.msra.mxu0 0
        %409 = vmatprep.subr.bf16.mxu0 0
        %410 = vmatpush1.bf16.msra.mxu0 0
        %411 = vmatprep.subr.bf16.mxu0 0
        %412 = vmatpush1.bf16.msra.mxu0 0
        %413 = vmatprep.subr.bf16.mxu0 0
        %414 = vmatpush1.bf16.msra.mxu0 0
        %415 = vmatprep.subr.bf16.mxu0 0
        %416 = vmatpush1.bf16.msra.mxu0 0
        %417 = vmatprep.subr.bf16.mxu0 0
        %418 = vmatpush1.bf16.msra.mxu0 0
        %419 = vmatprep.subr.bf16.mxu0 0
        %420 = vmatpush1.bf16.msra.mxu0 0
        %421 = vmatprep.subr.bf16.mxu0 0
        %422 = vmatpush1.bf16.msra.mxu0 0
        %423 = vmatprep.subr.bf16.mxu0 0
        %424 = vmatpush1.bf16.msra.mxu0 0
        %425 = vmatprep.subr.bf16.mxu0 0
        %426 = vmatpush1.bf16.msra.mxu0 0
        %427 = vmatprep.subr.bf16.mxu0 0
        %428 = vmatpush1.bf16.msra.mxu0 0
        %429 = vmatprep.subr.bf16.mxu0 0
        %430 = vmatpush1.bf16.msra.mxu0 0
        %431 = vmatprep.subr.bf16.mxu0 0
        %432 = vmatpush1.bf16.msra.mxu0 0
        %433 = vmatprep.subr.bf16.mxu0 0
        %434 = vmatpush1.bf16.msra.mxu0 0
        %435 = vmatprep.mubr.bf16.mxu0 0
        %436 = vmatmul.mubr.bf16.gmra.mrb[0].mxu0 %v401
        %v437 = vpop.f32.mrb[0].mxu0
        %v438 = vadd.f32 0.0, %v437
        %v439 = vpop.f32.mrb[0].mxu0
        %v440 = vpop.f32.mrb[0].mxu0
        %v441 = vpop.f32.mrb[0].mxu0
        %442 = vdwg.mxu0
        %v443 = vpack.c.bf16 %v438, %v438
        %v444 = vld [vmem:[#allocation2] sm:$0xf]
        %vm445 = vcmask 31744
        %v447 = vsel %vm445, %v443, 0
        %v450 = vsel %vm445, %v444, 0
        %452 = vmatprep.subr.bf16.mxu0 0
        %453 = vmatpush1.bf16.xpose.msra.mxu0 %v450
        %454 = vmatprep.subr.bf16.mxu0 0
        %455 = vmatpush1.bf16.xpose.msra.mxu0 0
        %456 = vmatprep.subr.bf16.mxu0 0
        %457 = vmatpush1.bf16.xpose.msra.mxu0 0
        %458 = vmatprep.subr.bf16.mxu0 0
        %459 = vmatpush1.bf16.xpose.msra.mxu0 0
        %460 = vmatprep.subr.bf16.mxu0 0
        %461 = vmatpush1.bf16.xpose.msra.mxu0 0
        %462 = vmatprep.subr.bf16.mxu0 0
        %463 = vmatpush1.bf16.xpose.msra.mxu0 0
        %464 = vmatprep.subr.bf16.mxu0 0
        %465 = vmatpush1.bf16.xpose.msra.mxu0 0
        %466 = vmatprep.subr.bf16.mxu0 0
        %467 = vmatpush1.bf16.xpose.msra.mxu0 0
        %468 = vmatprep.subr.bf16.mxu0 0
        %469 = vmatpush1.bf16.xpose.msra.mxu0 0
        %470 = vmatprep.subr.bf16.mxu0 0
        %471 = vmatpush1.bf16.xpose.msra.mxu0 0
        %472 = vmatprep.subr.bf16.mxu0 0
        %473 = vmatpush1.bf16.xpose.msra.mxu0 0
        %474 = vmatprep.subr.bf16.mxu0 0
        %475 = vmatpush1.bf16.xpose.msra.mxu0 0
        %476 = vmatprep.subr.bf16.mxu0 0
        %477 = vmatpush1.bf16.xpose.msra.mxu0 0
        %478 = vmatprep.subr.bf16.mxu0 0
        %479 = vmatpush1.bf16.xpose.msra.mxu0 0
        %480 = vmatprep.subr.bf16.mxu0 0
        %481 = vmatpush1.bf16.xpose.msra.mxu0 0
        %482 = vmatprep.subr.bf16.mxu0 0
        %483 = vmatpush1.bf16.xpose.msra.mxu0 0
        %484 = vmatprep.mubr.bf16.mxu0 0
        %485 = vmatmul.mubr.bf16.gmra.mrb[0].mxu0 %v447
        %v486 = vpop.f32.mrb[0].mxu0
        %v487 = vadd.f32 0.0, %v486
        %v488 = vpop.f32.mrb[0].mxu0
        %v489 = vpop.f32.mrb[0].mxu0
        %v490 = vpop.f32.mrb[0].mxu0
        %491 = vdwg.mxu0
        %vm492 = vcmask 64512
        %v493 = vsel %vm492, %v487, -inf
        %494 = vmax.xlane.f32.xlu0 %v493
        %v495 = vpop.xlane.xlu0 %494
        %v496 = vsub.f32 %v487, %v495
        %v497 = vmul.f32 %v496, 1.442695
        %v498 = vpow.pop %v497
        %v499 = vsel %vm492, %v498, 0.0
        %500 = vadd.xlane.f32.xlu0 %v499
        %v501 = vpop.xlane.xlu0 %500
        %v502 = vrcp.pop %v501
        %v503 = vmul.f32 %v501, %v502
        %v504 = vsub.f32 2.0, %v503
        %v505 = vmul.f32 %v502, %v504
        %v506 = vmul.f32 %v498, %v505
        %507 = vst.msk [vmem:[%s320] sm:$0xff] %vm492, %v506
        %v508 = vpack.c.bf16 %v506, %v506
        %v510 = vunpack.c.l.b16 %v444
        %v511 = vpack.c.b16 %v510, %v510
        %512 = vrot.lane.b32.xlu0 %v511, 96
        %v513 = vpop.permute.xlu0 %512
        %v515 = vsel %vm492, %v508, 0
        %vm517 = vcmask 1043456
        %v519 = vsel %vm517, %v513, 0
        %521 = vmatprep.subr.bf16.mxu0 0
        %522 = vmatpush1.bf16.msra.mxu0 %v519
        %523 = vmatprep.subr.bf16.mxu0 0
        %524 = vmatpush1.bf16.msra.mxu0 0
        %525 = vmatprep.subr.bf16.mxu0 0
        %526 = vmatpush1.bf16.msra.mxu0 0
        %527 = vmatprep.subr.bf16.mxu0 0
        %528 = vmatpush1.bf16.msra.mxu0 0
        %529 = vmatprep.subr.bf16.mxu0 0
        %530 = vmatpush1.bf16.msra.mxu0 0
        %531 = vmatprep.subr.bf16.mxu0 0
        %532 = vmatpush1.bf16.msra.mxu0 0
        %533 = vmatprep.subr.bf16.mxu0 0
        %534 = vmatpush1.bf16.msra.mxu0 0
        %535 = vmatprep.subr.bf16.mxu0 0
        %536 = vmatpush1.bf16.msra.mxu0 0
        %537 = vmatprep.subr.bf16.mxu0 0
        %538 = vmatpush1.bf16.msra.mxu0 0
        %539 = vmatprep.subr.bf16.mxu0 0
        %540 = vmatpush1.bf16.msra.mxu0 0
        %541 = vmatprep.subr.bf16.mxu0 0
        %542 = vmatpush1.bf16.msra.mxu0 0
        %543 = vmatprep.subr.bf16.mxu0 0
        %544 = vmatpush1.bf16.msra.mxu0 0
        %545 = vmatprep.subr.bf16.mxu0 0
        %546 = vmatpush1.bf16.msra.mxu0 0
        %547 = vmatprep.subr.bf16.mxu0 0
        %548 = vmatpush1.bf16.msra.mxu0 0
        %549 = vmatprep.subr.bf16.mxu0 0
        %550 = vmatpush1.bf16.msra.mxu0 0
        %551 = vmatprep.subr.bf16.mxu0 0
        %552 = vmatpush1.bf16.msra.mxu0 0
        %553 = vmatprep.mubr.bf16.mxu0 0
        %554 = vmatmul.mubr.bf16.gmra.mrb[0].mxu0 %v515
        %v555 = vpop.f32.mrb[0].mxu0
        %v556 = vadd.f32 0.0, %v555
        %v557 = vpop.f32.mrb[0].mxu0
        %v558 = vpop.f32.mrb[0].mxu0
        %v559 = vpop.f32.mrb[0].mxu0
        %560 = vdwg.mxu0
        %562 = vrot.lane.b32.xlu0 %v443, 124
        %v563 = vpop.permute.xlu0 %562
        %564 = vrot.lane.b32.xlu0 %v511, 124
        %v565 = vpop.permute.xlu0 %564
        %v567 = vsel %vm445, %v563, 0
        %v570 = vsel %vm445, %v565, 0
        %572 = vmatprep.subr.bf16.mxu0 0
        %573 = vmatpush1.bf16.xpose.msra.mxu0 %v570
        %574 = vmatprep.subr.bf16.mxu0 0
        %575 = vmatpush1.bf16.xpose.msra.mxu0 0
        %576 = vmatprep.subr.bf16.mxu0 0
        %577 = vmatpush1.bf16.xpose.msra.mxu0 0
        %578 = vmatprep.subr.bf16.mxu0 0
        %579 = vmatpush1.bf16.xpose.msra.mxu0 0
        %580 = vmatprep.subr.bf16.mxu0 0
        %581 = vmatpush1.bf16.xpose.msra.mxu0 0
        %582 = vmatprep.subr.bf16.mxu0 0
        %583 = vmatpush1.bf16.xpose.msra.mxu0 0
        %584 = vmatprep.subr.bf16.mxu0 0
        %585 = vmatpush1.bf16.xpose.msra.mxu0 0
        %586 = vmatprep.subr.bf16.mxu0 0
        %587 = vmatpush1.bf16.xpose.msra.mxu0 0
        %588 = vmatprep.subr.bf16.mxu0 0
        %589 = vmatpush1.bf16.xpose.msra.mxu0 0
        %590 = vmatprep.subr.bf16.mxu0 0
        %591 = vmatpush1.bf16.xpose.msra.mxu0 0
        %592 = vmatprep.subr.bf16.mxu0 0
        %593 = vmatpush1.bf16.xpose.msra.mxu0 0
        %594 = vmatprep.subr.bf16.mxu0 0
        %595 = vmatpush1.bf16.xpose.msra.mxu0 0
        %596 = vmatprep.subr.bf16.mxu0 0
        %597 = vmatpush1.bf16.xpose.msra.mxu0 0
        %598 = vmatprep.subr.bf16.mxu0 0
        %599 = vmatpush1.bf16.xpose.msra.mxu0 0
        %600 = vmatprep.subr.bf16.mxu0 0
        %601 = vmatpush1.bf16.xpose.msra.mxu0 0
        %602 = vmatprep.subr.bf16.mxu0 0
        %603 = vmatpush1.bf16.xpose.msra.mxu0 0
        %604 = vmatprep.mubr.bf16.mxu0 0
        %605 = vmatmul.mubr.bf16.gmra.mrb[0].mxu0 %v567
        %v606 = vpop.f32.mrb[0].mxu0
        %v607 = vadd.f32 0.0, %v606
        %v608 = vpop.f32.mrb[0].mxu0
        %v609 = vpop.f32.mrb[0].mxu0
        %v610 = vpop.f32.mrb[0].mxu0
        %611 = vdwg.mxu0
        %v612 = vsel %vm492, %v607, -inf
        %613 = vmax.xlane.f32.xlu0 %v612
        %v614 = vpop.xlane.xlu0 %613
        %v615 = vsub.f32 %v607, %v614
        %v616 = vmul.f32 %v615, 1.442695
        %v617 = vpow.pop %v616
        %v618 = vsel %vm492, %v617, 0.0
        %619 = vadd.xlane.f32.xlu0 %v618
        %v620 = vpop.xlane.xlu0 %619
        %v621 = vrcp.pop %v620
        %v622 = vmul.f32 %v620, %v621
        %v623 = vsub.f32 2.0, %v622
        %v624 = vmul.f32 %v621, %v623
        %v625 = vmul.f32 %v617, %v624
        %s626 = scalar_lea.vmem %s320, 8 [#allocation10]
        %627 = vst.msk [vmem:[%s626] sm:$0xff] %vm492, %v625
        %v628 = vpack.c.bf16 %v625, %v625
        %629 = vrot.lane.b32.xlu0 %v511, 92
        %v630 = vpop.permute.xlu0 %629
        %v632 = vsel %vm492, %v628, 0
        %v635 = vsel %vm517, %v630, 0
        %637 = vmatprep.subr.bf16.mxu0 0
        %638 = vmatpush1.bf16.msra.mxu0 %v635
        %639 = vmatprep.subr.bf16.mxu0 0
        %640 = vmatpush1.bf16.msra.mxu0 0
        %641 = vmatprep.subr.bf16.mxu0 0
        %642 = vmatpush1.bf16.msra.mxu0 0
        %643 = vmatprep.subr.bf16.mxu0 0
        %644 = vmatpush1.bf16.msra.mxu0 0
        %645 = vmatprep.subr.bf16.mxu0 0
        %646 = vmatpush1.bf16.msra.mxu0 0
        %647 = vmatprep.subr.bf16.mxu0 0
        %648 = vmatpush1.bf16.msra.mxu0 0
        %649 = vmatprep.subr.bf16.mxu0 0
        %650 = vmatpush1.bf16.msra.mxu0 0
        %651 = vmatprep.subr.bf16.mxu0 0
        %652 = vmatpush1.bf16.msra.mxu0 0
        %653 = vmatprep.subr.bf16.mxu0 0
        %654 = vmatpush1.bf16.msra.mxu0 0
        %655 = vmatprep.subr.bf16.mxu0 0
        %656 = vmatpush1.bf16.msra.mxu0 0
        %657 = vmatprep.subr.bf16.mxu0 0
        %658 = vmatpush1.bf16.msra.mxu0 0
        %659 = vmatprep.subr.bf16.mxu0 0
        %660 = vmatpush1.bf16.msra.mxu0 0
        %661 = vmatprep.subr.bf16.mxu0 0
        %662 = vmatpush1.bf16.msra.mxu0 0
        %663 = vmatprep.subr.bf16.mxu0 0
        %664 = vmatpush1.bf16.msra.mxu0 0
        %665 = vmatprep.subr.bf16.mxu0 0
        %666 = vmatpush1.bf16.msra.mxu0 0
        %667 = vmatprep.subr.bf16.mxu0 0
        %668 = vmatpush1.bf16.msra.mxu0 0
        %669 = vmatprep.mubr.bf16.mxu0 0
        %670 = vmatmul.mubr.bf16.gmra.mrb[0].mxu0 %v632
        %v671 = vpop.f32.mrb[0].mxu0
        %v672 = vadd.f32 0.0, %v671
        %v673 = vpop.f32.mrb[0].mxu0
        %v674 = vpop.f32.mrb[0].mxu0
        %v675 = vpop.f32.mrb[0].mxu0
        %676 = vdwg.mxu0
        %677 = vrot.lane.b32.xlu0 %v443, 120
        %v678 = vpop.permute.xlu0 %677
        %679 = vrot.lane.b32.xlu0 %v511, 120
        %v680 = vpop.permute.xlu0 %679
        %v682 = vsel %vm445, %v678, 0
        %v685 = vsel %vm445, %v680, 0
        %687 = vmatprep.subr.bf16.mxu0 0
        %688 = vmatpush1.bf16.xpose.msra.mxu0 %v685
        %689 = vmatprep.subr.bf16.mxu0 0
        %690 = vmatpush1.bf16.xpose.msra.mxu0 0
        %691 = vmatprep.subr.bf16.mxu0 0
        %692 = vmatpush1.bf16.xpose.msra.mxu0 0
        %693 = vmatprep.subr.bf16.mxu0 0
        %694 = vmatpush1.bf16.xpose.msra.mxu0 0
        %695 = vmatprep.subr.bf16.mxu0 0
        %696 = vmatpush1.bf16.xpose.msra.mxu0 0
        %697 = vmatprep.subr.bf16.mxu0 0
        %698 = vmatpush1.bf16.xpose.msra.mxu0 0
        %699 = vmatprep.subr.bf16.mxu0 0
        %700 = vmatpush1.bf16.xpose.msra.mxu0 0
        %701 = vmatprep.subr.bf16.mxu0 0
        %702 = vmatpush1.bf16.xpose.msra.mxu0 0
        %703 = vmatprep.subr.bf16.mxu0 0
        %704 = vmatpush1.bf16.xpose.msra.mxu0 0
        %705 = vmatprep.subr.bf16.mxu0 0
        %706 = vmatpush1.bf16.xpose.msra.mxu0 0
        %707 = vmatprep.subr.bf16.mxu0 0
        %708 = vmatpush1.bf16.xpose.msra.mxu0 0
        %709 = vmatprep.subr.bf16.mxu0 0
        %710 = vmatpush1.bf16.xpose.msra.mxu0 0
        %711 = vmatprep.subr.bf16.mxu0 0
        %712 = vmatpush1.bf16.xpose.msra.mxu0 0
        %713 = vmatprep.subr.bf16.mxu0 0
        %714 = vmatpush1.bf16.xpose.msra.mxu0 0
        %715 = vmatprep.subr.bf16.mxu0 0
        %716 = vmatpush1.bf16.xpose.msra.mxu0 0
        %717 = vmatprep.subr.bf16.mxu0 0
        %718 = vmatpush1.bf16.xpose.msra.mxu0 0
        %719 = vmatprep.mubr.bf16.mxu0 0
        %720 = vmatmul.mubr.bf16.gmra.mrb[0].mxu0 %v682
        %v721 = vpop.f32.mrb[0].mxu0
        %v722 = vadd.f32 0.0, %v721
        %v723 = vpop.f32.mrb[0].mxu0
        %v724 = vpop.f32.mrb[0].mxu0
        %v725 = vpop.f32.mrb[0].mxu0
        %726 = vdwg.mxu0
        %v727 = vsel %vm492, %v722, -inf
        %728 = vmax.xlane.f32.xlu0 %v727
        %v729 = vpop.xlane.xlu0 %728
        %v730 = vsub.f32 %v722, %v729
        %v731 = vmul.f32 %v730, 1.442695
        %v732 = vpow.pop %v731
        %v733 = vsel %vm492, %v732, 0.0
        %734 = vadd.xlane.f32.xlu0 %v733
        %v735 = vpop.xlane.xlu0 %734
        %v736 = vrcp.pop %v735
        %v737 = vmul.f32 %v735, %v736
        %v738 = vsub.f32 2.0, %v737
        %v739 = vmul.f32 %v736, %v738
        %v740 = vmul.f32 %v732, %v739
        %s741 = scalar_lea.vmem %s320, 16 [#allocation10]
        %742 = vst.msk [vmem:[%s741] sm:$0xff] %vm492, %v740
        %v743 = vpack.c.bf16 %v740, %v740
        %744 = vrot.lane.b32.xlu0 %v511, 88
        %v745 = vpop.permute.xlu0 %744
        %v747 = vsel %vm492, %v743, 0
        %v750 = vsel %vm517, %v745, 0
        %752 = vmatprep.subr.bf16.mxu0 0
        %753 = vmatpush1.bf16.msra.mxu0 %v750
        %754 = vmatprep.subr.bf16.mxu0 0
        %755 = vmatpush1.bf16.msra.mxu0 0
        %756 = vmatprep.subr.bf16.mxu0 0
        %757 = vmatpush1.bf16.msra.mxu0 0
        %758 = vmatprep.subr.bf16.mxu0 0
        %759 = vmatpush1.bf16.msra.mxu0 0
        %760 = vmatprep.subr.bf16.mxu0 0
        %761 = vmatpush1.bf16.msra.mxu0 0
        %762 = vmatprep.subr.bf16.mxu0 0
        %763 = vmatpush1.bf16.msra.mxu0 0
        %764 = vmatprep.subr.bf16.mxu0 0
        %765 = vmatpush1.bf16.msra.mxu0 0
        %766 = vmatprep.subr.bf16.mxu0 0
        %767 = vmatpush1.bf16.msra.mxu0 0
        %768 = vmatprep.subr.bf16.mxu0 0
        %769 = vmatpush1.bf16.msra.mxu0 0
        %770 = vmatprep.subr.bf16.mxu0 0
        %771 = vmatpush1.bf16.msra.mxu0 0
        %772 = vmatprep.subr.bf16.mxu0 0
        %773 = vmatpush1.bf16.msra.mxu0 0
        %774 = vmatprep.subr.bf16.mxu0 0
        %775 = vmatpush1.bf16.msra.mxu0 0
        %776 = vmatprep.subr.bf16.mxu0 0
        %777 = vmatpush1.bf16.msra.mxu0 0
        %778 = vmatprep.subr.bf16.mxu0 0
        %779 = vmatpush1.bf16.msra.mxu0 0
        %780 = vmatprep.subr.bf16.mxu0 0
        %781 = vmatpush1.bf16.msra.mxu0 0
        %782 = vmatprep.subr.bf16.mxu0 0
        %783 = vmatpush1.bf16.msra.mxu0 0
        %784 = vmatprep.mubr.bf16.mxu0 0
        %785 = vmatmul.mubr.bf16.gmra.mrb[0].mxu0 %v747
        %v786 = vpop.f32.mrb[0].mxu0
        %v787 = vadd.f32 0.0, %v786
        %v788 = vpop.f32.mrb[0].mxu0
        %v789 = vpop.f32.mrb[0].mxu0
        %v790 = vpop.f32.mrb[0].mxu0
        %791 = vdwg.mxu0
        %792 = vrot.lane.b32.xlu0 %v443, 116
        %v793 = vpop.permute.xlu0 %792
        %794 = vrot.lane.b32.xlu0 %v511, 116
        %v795 = vpop.permute.xlu0 %794
        %v797 = vsel %vm445, %v793, 0
        %v800 = vsel %vm445, %v795, 0
        %802 = vmatprep.subr.bf16.mxu0 0
        %803 = vmatpush1.bf16.xpose.msra.mxu0 %v800
        %804 = vmatprep.subr.bf16.mxu0 0
        %805 = vmatpush1.bf16.xpose.msra.mxu0 0
        %806 = vmatprep.subr.bf16.mxu0 0
        %807 = vmatpush1.bf16.xpose.msra.mxu0 0
        %808 = vmatprep.subr.bf16.mxu0 0
        %809 = vmatpush1.bf16.xpose.msra.mxu0 0
        %810 = vmatprep.subr.bf16.mxu0 0
        %811 = vmatpush1.bf16.xpose.msra.mxu0 0
        %812 = vmatprep.subr.bf16.mxu0 0
        %813 = vmatpush1.bf16.xpose.msra.mxu0 0
        %814 = vmatprep.subr.bf16.mxu0 0
        %815 = vmatpush1.bf16.xpose.msra.mxu0 0
        %816 = vmatprep.subr.bf16.mxu0 0
        %817 = vmatpush1.bf16.xpose.msra.mxu0 0
        %818 = vmatprep.subr.bf16.mxu0 0
        %819 = vmatpush1.bf16.xpose.msra.mxu0 0
        %820 = vmatprep.subr.bf16.mxu0 0
        %821 = vmatpush1.bf16.xpose.msra.mxu0 0
        %822 = vmatprep.subr.bf16.mxu0 0
        %823 = vmatpush1.bf16.xpose.msra.mxu0 0
        %824 = vmatprep.subr.bf16.mxu0 0
        %825 = vmatpush1.bf16.xpose.msra.mxu0 0
        %826 = vmatprep.subr.bf16.mxu0 0
        %827 = vmatpush1.bf16.xpose.msra.mxu0 0
        %828 = vmatprep.subr.bf16.mxu0 0
        %829 = vmatpush1.bf16.xpose.msra.mxu0 0
        %830 = vmatprep.subr.bf16.mxu0 0
        %831 = vmatpush1.bf16.xpose.msra.mxu0 0
        %832 = vmatprep.subr.bf16.mxu0 0
        %833 = vmatpush1.bf16.xpose.msra.mxu0 0
        %834 = vmatprep.mubr.bf16.mxu0 0
        %835 = vmatmul.mubr.bf16.gmra.mrb[0].mxu0 %v797
        %v836 = vpop.f32.mrb[0].mxu0
        %v837 = vadd.f32 0.0, %v836
        %v838 = vpop.f32.mrb[0].mxu0
        %v839 = vpop.f32.mrb[0].mxu0
        %v840 = vpop.f32.mrb[0].mxu0
        %841 = vdwg.mxu0
        %v842 = vsel %vm492, %v837, -inf
        %843 = vmax.xlane.f32.xlu0 %v842
        %v844 = vpop.xlane.xlu0 %843
        %v845 = vsub.f32 %v837, %v844
        %v846 = vmul.f32 %v845, 1.442695
        %v847 = vpow.pop %v846
        %v848 = vsel %vm492, %v847, 0.0
        %849 = vadd.xlane.f32.xlu0 %v848
        %v850 = vpop.xlane.xlu0 %849
        %v851 = vrcp.pop %v850
        %v852 = vmul.f32 %v850, %v851
        %v853 = vsub.f32 2.0, %v852
        %v854 = vmul.f32 %v851, %v853
        %v855 = vmul.f32 %v847, %v854
        %s856 = scalar_lea.vmem %s320, 24 [#allocation10]
        %857 = vst.msk [vmem:[%s856] sm:$0xff] %vm492, %v855
        %v858 = vpack.c.bf16 %v855, %v855
        %859 = vrot.lane.b32.xlu0 %v511, 84
        %v860 = vpop.permute.xlu0 %859
        %v862 = vsel %vm492, %v858, 0
        %v865 = vsel %vm517, %v860, 0
        %867 = vmatprep.subr.bf16.mxu0 0
        %868 = vmatpush1.bf16.msra.mxu0 %v865
        %869 = vmatprep.subr.bf16.mxu0 0
        %870 = vmatpush1.bf16.msra.mxu0 0
        %871 = vmatprep.subr.bf16.mxu0 0
        %872 = vmatpush1.bf16.msra.mxu0 0
        %873 = vmatprep.subr.bf16.mxu0 0
        %874 = vmatpush1.bf16.msra.mxu0 0
        %875 = vmatprep.subr.bf16.mxu0 0
        %876 = vmatpush1.bf16.msra.mxu0 0
        %877 = vmatprep.subr.bf16.mxu0 0
        %878 = vmatpush1.bf16.msra.mxu0 0
        %879 = vmatprep.subr.bf16.mxu0 0
        %880 = vmatpush1.bf16.msra.mxu0 0
        %881 = vmatprep.subr.bf16.mxu0 0
        %882 = vmatpush1.bf16.msra.mxu0 0
        %883 = vmatprep.subr.bf16.mxu0 0
        %884 = vmatpush1.bf16.msra.mxu0 0
        %885 = vmatprep.subr.bf16.mxu0 0
        %886 = vmatpush1.bf16.msra.mxu0 0
        %887 = vmatprep.subr.bf16.mxu0 0
        %888 = vmatpush1.bf16.msra.mxu0 0
        %889 = vmatprep.subr.bf16.mxu0 0
        %890 = vmatpush1.bf16.msra.mxu0 0
        %891 = vmatprep.subr.bf16.mxu0 0
        %892 = vmatpush1.bf16.msra.mxu0 0
        %893 = vmatprep.subr.bf16.mxu0 0
        %894 = vmatpush1.bf16.msra.mxu0 0
        %895 = vmatprep.subr.bf16.mxu0 0
        %896 = vmatpush1.bf16.msra.mxu0 0
        %897 = vmatprep.subr.bf16.mxu0 0
        %898 = vmatpush1.bf16.msra.mxu0 0
        %899 = vmatprep.mubr.bf16.mxu0 0
        %900 = vmatmul.mubr.bf16.gmra.mrb[0].mxu0 %v862
        %v901 = vpop.f32.mrb[0].mxu0
        %v902 = vadd.f32 0.0, %v901
        %v903 = vpop.f32.mrb[0].mxu0
        %v904 = vpop.f32.mrb[0].mxu0
        %v905 = vpop.f32.mrb[0].mxu0
        %906 = vdwg.mxu0
        %907 = vrot.lane.b32.xlu0 %v443, 112
        %v908 = vpop.permute.xlu0 %907
        %909 = vrot.lane.b32.xlu0 %v511, 112
        %v910 = vpop.permute.xlu0 %909
        %v912 = vsel %vm445, %v908, 0
        %v915 = vsel %vm445, %v910, 0
        %917 = vmatprep.subr.bf16.mxu0 0
        %918 = vmatpush1.bf16.xpose.msra.mxu0 %v915
        %919 = vmatprep.subr.bf16.mxu0 0
        %920 = vmatpush1.bf16.xpose.msra.mxu0 0
        %921 = vmatprep.subr.bf16.mxu0 0
        %922 = vmatpush1.bf16.xpose.msra.mxu0 0
        %923 = vmatprep.subr.bf16.mxu0 0
        %924 = vmatpush1.bf16.xpose.msra.mxu0 0
        %925 = vmatprep.subr.bf16.mxu0 0
        %926 = vmatpush1.bf16.xpose.msra.mxu0 0
        %927 = vmatprep.subr.bf16.mxu0 0
        %928 = vmatpush1.bf16.xpose.msra.mxu0 0
        %929 = vmatprep.subr.bf16.mxu0 0
        %930 = vmatpush1.bf16.xpose.msra.mxu0 0
        %931 = vmatprep.subr.bf16.mxu0 0
        %932 = vmatpush1.bf16.xpose.msra.mxu0 0
        %933 = vmatprep.subr.bf16.mxu0 0
        %934 = vmatpush1.bf16.xpose.msra.mxu0 0
        %935 = vmatprep.subr.bf16.mxu0 0
        %936 = vmatpush1.bf16.xpose.msra.mxu0 0
        %937 = vmatprep.subr.bf16.mxu0 0
        %938 = vmatpush1.bf16.xpose.msra.mxu0 0
        %939 = vmatprep.subr.bf16.mxu0 0
        %940 = vmatpush1.bf16.xpose.msra.mxu0 0
        %941 = vmatprep.subr.bf16.mxu0 0
        %942 = vmatpush1.bf16.xpose.msra.mxu0 0
        %943 = vmatprep.subr.bf16.mxu0 0
        %944 = vmatpush1.bf16.xpose.msra.mxu0 0
        %945 = vmatprep.subr.bf16.mxu0 0
        %946 = vmatpush1.bf16.xpose.msra.mxu0 0
        %947 = vmatprep.subr.bf16.mxu0 0
        %948 = vmatpush1.bf16.xpose.msra.mxu0 0
        %949 = vmatprep.mubr.bf16.mxu0 0
        %950 = vmatmul.mubr.bf16.gmra.mrb[0].mxu0 %v912
        %v951 = vpop.f32.mrb[0].mxu0
        %v952 = vadd.f32 0.0, %v951
        %v953 = vpop.f32.mrb[0].mxu0
        %v954 = vpop.f32.mrb[0].mxu0
        %v955 = vpop.f32.mrb[0].mxu0
        %956 = vdwg.mxu0
        %v957 = vsel %vm492, %v952, -inf
        %958 = vmax.xlane.f32.xlu0 %v957
        %v959 = vpop.xlane.xlu0 %958
        %v960 = vsub.f32 %v952, %v959
        %v961 = vmul.f32 %v960, 1.442695
        %v962 = vpow.pop %v961
        %v963 = vsel %vm492, %v962, 0.0
        %964 = vadd.xlane.f32.xlu0 %v963
        %v965 = vpop.xlane.xlu0 %964
        %v966 = vrcp.pop %v965
        %v967 = vmul.f32 %v965, %v966
        %v968 = vsub.f32 2.0, %v967
        %v969 = vmul.f32 %v966, %v968
        %v970 = vmul.f32 %v962, %v969
        %s971 = scalar_lea.vmem %s320, 32 [#allocation10]
        %972 = vst.msk [vmem:[%s971] sm:$0xff] %vm492, %v970
        %v973 = vpack.c.bf16 %v970, %v970
        %974 = vrot.lane.b32.xlu0 %v511, 80
        %v975 = vpop.permute.xlu0 %974
        %v977 = vsel %vm492, %v973, 0
        %v980 = vsel %vm517, %v975, 0
        %982 = vmatprep.subr.bf16.mxu0 0
        %983 = vmatpush1.bf16.msra.mxu0 %v980
        %984 = vmatprep.subr.bf16.mxu0 0
        %985 = vmatpush1.bf16.msra.mxu0 0
        %986 = vmatprep.subr.bf16.mxu0 0
        %987 = vmatpush1.bf16.msra.mxu0 0
        %988 = vmatprep.subr.bf16.mxu0 0
        %989 = vmatpush1.bf16.msra.mxu0 0
        %990 = vmatprep.subr.bf16.mxu0 0
        %991 = vmatpush1.bf16.msra.mxu0 0
        %992 = vmatprep.subr.bf16.mxu0 0
        %993 = vmatpush1.bf16.msra.mxu0 0
        %994 = vmatprep.subr.bf16.mxu0 0
        %995 = vmatpush1.bf16.msra.mxu0 0
        %996 = vmatprep.subr.bf16.mxu0 0
        %997 = vmatpush1.bf16.msra.mxu0 0
        %998 = vmatprep.subr.bf16.mxu0 0
        %999 = vmatpush1.bf16.msra.mxu0 0
        %1000 = vmatprep.subr.bf16.mxu0 0
        %1001 = vmatpush1.bf16.msra.mxu0 0
        %1002 = vmatprep.subr.bf16.mxu0 0
        %1003 = vmatpush1.bf16.msra.mxu0 0
        %1004 = vmatprep.subr.bf16.mxu0 0
        %1005 = vmatpush1.bf16.msra.mxu0 0
        %1006 = vmatprep.subr.bf16.mxu0 0
        %1007 = vmatpush1.bf16.msra.mxu0 0
        %1008 = vmatprep.subr.bf16.mxu0 0
        %1009 = vmatpush1.bf16.msra.mxu0 0
        %1010 = vmatprep.subr.bf16.mxu0 0
        %1011 = vmatpush1.bf16.msra.mxu0 0
        %1012 = vmatprep.subr.bf16.mxu0 0
        %1013 = vmatpush1.bf16.msra.mxu0 0
        %1014 = vmatprep.mubr.bf16.mxu0 0
        %1015 = vmatmul.mubr.bf16.gmra.mrb[0].mxu0 %v977
        %v1016 = vpop.f32.mrb[0].mxu0
        %v1017 = vadd.f32 0.0, %v1016
        %v1018 = vpop.f32.mrb[0].mxu0
        %v1019 = vpop.f32.mrb[0].mxu0
        %v1020 = vpop.f32.mrb[0].mxu0
        %1021 = vdwg.mxu0
        %1022 = vrot.lane.b32.xlu0 %v443, 108
        %v1023 = vpop.permute.xlu0 %1022
        %1024 = vrot.lane.b32.xlu0 %v511, 108
        %v1025 = vpop.permute.xlu0 %1024
        %v1027 = vsel %vm445, %v1023, 0
        %v1030 = vsel %vm445, %v1025, 0
        %1032 = vmatprep.subr.bf16.mxu0 0
        %1033 = vmatpush1.bf16.xpose.msra.mxu0 %v1030
        %1034 = vmatprep.subr.bf16.mxu0 0
        %1035 = vmatpush1.bf16.xpose.msra.mxu0 0
        %1036 = vmatprep.subr.bf16.mxu0 0
        %1037 = vmatpush1.bf16.xpose.msra.mxu0 0
        %1038 = vmatprep.subr.bf16.mxu0 0
        %1039 = vmatpush1.bf16.xpose.msra.mxu0 0
        %1040 = vmatprep.subr.bf16.mxu0 0
        %1041 = vmatpush1.bf16.xpose.msra.mxu0 0
        %1042 = vmatprep.subr.bf16.mxu0 0
        %1043 = vmatpush1.bf16.xpose.msra.mxu0 0
        %1044 = vmatprep.subr.bf16.mxu0 0
        %1045 = vmatpush1.bf16.xpose.msra.mxu0 0
        %1046 = vmatprep.subr.bf16.mxu0 0
        %1047 = vmatpush1.bf16.xpose.msra.mxu0 0
        %1048 = vmatprep.subr.bf16.mxu0 0
        %1049 = vmatpush1.bf16.xpose.msra.mxu0 0
        %1050 = vmatprep.subr.bf16.mxu0 0
        %1051 = vmatpush1.bf16.xpose.msra.mxu0 0
        %1052 = vmatprep.subr.bf16.mxu0 0
        %1053 = vmatpush1.bf16.xpose.msra.mxu0 0
        %1054 = vmatprep.subr.bf16.mxu0 0
        %1055 = vmatpush1.bf16.xpose.msra.mxu0 0
        %1056 = vmatprep.subr.bf16.mxu0 0
        %1057 = vmatpush1.bf16.xpose.msra.mxu0 0
        %1058 = vmatprep.subr.bf16.mxu0 0
        %1059 = vmatpush1.bf16.xpose.msra.mxu0 0
        %1060 = vmatprep.subr.bf16.mxu0 0
        %1061 = vmatpush1.bf16.xpose.msra.mxu0 0
        %1062 = vmatprep.subr.bf16.mxu0 0
        %1063 = vmatpush1.bf16.xpose.msra.mxu0 0
        %1064 = vmatprep.mubr.bf16.mxu0 0
        %1065 = vmatmul.mubr.bf16.gmra.mrb[0].mxu0 %v1027
        %v1066 = vpop.f32.mrb[0].mxu0
        %v1067 = vadd.f32 0.0, %v1066
        %v1068 = vpop.f32.mrb[0].mxu0
        %v1069 = vpop.f32.mrb[0].mxu0
        %v1070 = vpop.f32.mrb[0].mxu0
        %1071 = vdwg.mxu0
        %v1072 = vsel %vm492, %v1067, -inf
        %1073 = vmax.xlane.f32.xlu0 %v1072
        %v1074 = vpop.xlane.xlu0 %1073
        %v1075 = vsub.f32 %v1067, %v1074
        %v1076 = vmul.f32 %v1075, 1.442695
        %v1077 = vpow.pop %v1076
        %v1078 = vsel %vm492, %v1077, 0.0
        %1079 = vadd.xlane.f32.xlu0 %v1078
        %v1080 = vpop.xlane.xlu0 %1079
        %v1081 = vrcp.pop %v1080
        %v1082 = vmul.f32 %v1080, %v1081
        %v1083 = vsub.f32 2.0, %v1082
        %v1084 = vmul.f32 %v1081, %v1083
        %v1085 = vmul.f32 %v1077, %v1084
        %s1086 = scalar_lea.vmem %s320, 40 [#allocation10]
        %1087 = vst.msk [vmem:[%s1086] sm:$0xff] %vm492, %v1085
        %v1088 = vpack.c.bf16 %v1085, %v1085
        %1089 = vrot.lane.b32.xlu0 %v511, 76
        %v1090 = vpop.permute.xlu0 %1089
        %v1092 = vsel %vm492, %v1088, 0
        %v1095 = vsel %vm517, %v1090, 0
        %1097 = vmatprep.subr.bf16.mxu0 0
        %1098 = vmatpush1.bf16.msra.mxu0 %v1095
        %1099 = vmatprep.subr.bf16.mxu0 0
        %1100 = vmatpush1.bf16.msra.mxu0 0
        %1101 = vmatprep.subr.bf16.mxu0 0
        %1102 = vmatpush1.bf16.msra.mxu0 0
        %1103 = vmatprep.subr.bf16.mxu0 0
        %1104 = vmatpush1.bf16.msra.mxu0 0
        %1105 = vmatprep.subr.bf16.mxu0 0
        %1106 = vmatpush1.bf16.msra.mxu0 0
        %1107 = vmatprep.subr.bf16.mxu0 0
        %1108 = vmatpush1.bf16.msra.mxu0 0
        %1109 = vmatprep.subr.bf16.mxu0 0
        %1110 = vmatpush1.bf16.msra.mxu0 0
        %1111 = vmatprep.subr.bf16.mxu0 0
        %1112 = vmatpush1.bf16.msra.mxu0 0
        %1113 = vmatprep.subr.bf16.mxu0 0
        %1114 = vmatpush1.bf16.msra.mxu0 0
        %1115 = vmatprep.subr.bf16.mxu0 0
        %1116 = vmatpush1.bf16.msra.mxu0 0
        %1117 = vmatprep.subr.bf16.mxu0 0
        %1118 = vmatpush1.bf16.msra.mxu0 0
        %1119 = vmatprep.subr.bf16.mxu0 0
        %1120 = vmatpush1.bf16.msra.mxu0 0
        %1121 = vmatprep.subr.bf16.mxu0 0
        %1122 = vmatpush1.bf16.msra.mxu0 0
        %1123 = vmatprep.subr.bf16.mxu0 0
        %1124 = vmatpush1.bf16.msra.mxu0 0
        %1125 = vmatprep.subr.bf16.mxu0 0
        %1126 = vmatpush1.bf16.msra.mxu0 0
        %1127 = vmatprep.subr.bf16.mxu0 0
        %1128 = vmatpush1.bf16.msra.mxu0 0
        %1129 = vmatprep.mubr.bf16.mxu0 0
        %1130 = vmatmul.mubr.bf16.gmra.mrb[0].mxu0 %v1092
        %v1131 = vpop.f32.mrb[0].mxu0
        %v1132 = vadd.f32 0.0, %v1131
        %v1133 = vpop.f32.mrb[0].mxu0
        %v1134 = vpop.f32.mrb[0].mxu0
        %v1135 = vpop.f32.mrb[0].mxu0
        %1136 = vdwg.mxu0
        %1137 = vrot.lane.b32.xlu0 %v443, 104
        %v1138 = vpop.permute.xlu0 %1137
        %1139 = vrot.lane.b32.xlu0 %v511, 104
        %v1140 = vpop.permute.xlu0 %1139
        %v1142 = vsel %vm445, %v1138, 0
        %v1145 = vsel %vm445, %v1140, 0
        %1147 = vmatprep.subr.bf16.mxu0 0
        %1148 = vmatpush1.bf16.xpose.msra.mxu0 %v1145
        %1149 = vmatprep.subr.bf16.mxu0 0
        %1150 = vmatpush1.bf16.xpose.msra.mxu0 0
        %1151 = vmatprep.subr.bf16.mxu0 0
        %1152 = vmatpush1.bf16.xpose.msra.mxu0 0
        %1153 = vmatprep.subr.bf16.mxu0 0
        %1154 = vmatpush1.bf16.xpose.msra.mxu0 0
        %1155 = vmatprep.subr.bf16.mxu0 0
        %1156 = vmatpush1.bf16.xpose.msra.mxu0 0
        %1157 = vmatprep.subr.bf16.mxu0 0
        %1158 = vmatpush1.bf16.xpose.msra.mxu0 0
        %1159 = vmatprep.subr.bf16.mxu0 0
        %1160 = vmatpush1.bf16.xpose.msra.mxu0 0
        %1161 = vmatprep.subr.bf16.mxu0 0
        %1162 = vmatpush1.bf16.xpose.msra.mxu0 0
        %1163 = vmatprep.subr.bf16.mxu0 0
        %1164 = vmatpush1.bf16.xpose.msra.mxu0 0
        %1165 = vmatprep.subr.bf16.mxu0 0
        %1166 = vmatpush1.bf16.xpose.msra.mxu0 0
        %1167 = vmatprep.subr.bf16.mxu0 0
        %1168 = vmatpush1.bf16.xpose.msra.mxu0 0
        %1169 = vmatprep.subr.bf16.mxu0 0
        %1170 = vmatpush1.bf16.xpose.msra.mxu0 0
        %1171 = vmatprep.subr.bf16.mxu0 0
        %1172 = vmatpush1.bf16.xpose.msra.mxu0 0
        %1173 = vmatprep.subr.bf16.mxu0 0
        %1174 = vmatpush1.bf16.xpose.msra.mxu0 0
        %1175 = vmatprep.subr.bf16.mxu0 0
        %1176 = vmatpush1.bf16.xpose.msra.mxu0 0
        %1177 = vmatprep.subr.bf16.mxu0 0
        %1178 = vmatpush1.bf16.xpose.msra.mxu0 0
        %1179 = vmatprep.mubr.bf16.mxu0 0
        %1180 = vmatmul.mubr.bf16.gmra.mrb[0].mxu0 %v1142
        %v1181 = vpop.f32.mrb[0].mxu0
        %v1182 = vadd.f32 0.0, %v1181
        %v1183 = vpop.f32.mrb[0].mxu0
        %v1184 = vpop.f32.mrb[0].mxu0
        %v1185 = vpop.f32.mrb[0].mxu0
        %1186 = vdwg.mxu0
        %v1187 = vsel %vm492, %v1182, -inf
        %1188 = vmax.xlane.f32.xlu0 %v1187
        %v1189 = vpop.xlane.xlu0 %1188
        %v1190 = vsub.f32 %v1182, %v1189
        %v1191 = vmul.f32 %v1190, 1.442695
        %v1192 = vpow.pop %v1191
        %v1193 = vsel %vm492, %v1192, 0.0
        %1194 = vadd.xlane.f32.xlu0 %v1193
        %v1195 = vpop.xlane.xlu0 %1194
        %v1196 = vrcp.pop %v1195
        %v1197 = vmul.f32 %v1195, %v1196
        %v1198 = vsub.f32 2.0, %v1197
        %v1199 = vmul.f32 %v1196, %v1198
        %v1200 = vmul.f32 %v1192, %v1199
        %s1201 = scalar_lea.vmem %s320, 48 [#allocation10]
        %1202 = vst.msk [vmem:[%s1201] sm:$0xff] %vm492, %v1200
        %v1203 = vpack.c.bf16 %v1200, %v1200
        %1204 = vrot.lane.b32.xlu0 %v511, 72
        %v1205 = vpop.permute.xlu0 %1204
        %v1207 = vsel %vm492, %v1203, 0
        %v1210 = vsel %vm517, %v1205, 0
        %1212 = vmatprep.subr.bf16.mxu0 0
        %1213 = vmatpush1.bf16.msra.mxu0 %v1210
        %1214 = vmatprep.subr.bf16.mxu0 0
        %1215 = vmatpush1.bf16.msra.mxu0 0
        %1216 = vmatprep.subr.bf16.mxu0 0
        %1217 = vmatpush1.bf16.msra.mxu0 0
        %1218 = vmatprep.subr.bf16.mxu0 0
        %1219 = vmatpush1.bf16.msra.mxu0 0
        %1220 = vmatprep.subr.bf16.mxu0 0
        %1221 = vmatpush1.bf16.msra.mxu0 0
        %1222 = vmatprep.subr.bf16.mxu0 0
        %1223 = vmatpush1.bf16.msra.mxu0 0
        %1224 = vmatprep.subr.bf16.mxu0 0
        %1225 = vmatpush1.bf16.msra.mxu0 0
        %1226 = vmatprep.subr.bf16.mxu0 0
        %1227 = vmatpush1.bf16.msra.mxu0 0
        %1228 = vmatprep.subr.bf16.mxu0 0
        %1229 = vmatpush1.bf16.msra.mxu0 0
        %1230 = vmatprep.subr.bf16.mxu0 0
        %1231 = vmatpush1.bf16.msra.mxu0 0
        %1232 = vmatprep.subr.bf16.mxu0 0
        %1233 = vmatpush1.bf16.msra.mxu0 0
        %1234 = vmatprep.subr.bf16.mxu0 0
        %1235 = vmatpush1.bf16.msra.mxu0 0
        %1236 = vmatprep.subr.bf16.mxu0 0
        %1237 = vmatpush1.bf16.msra.mxu0 0
        %1238 = vmatprep.subr.bf16.mxu0 0
        %1239 = vmatpush1.bf16.msra.mxu0 0
        %1240 = vmatprep.subr.bf16.mxu0 0
        %1241 = vmatpush1.bf16.msra.mxu0 0
        %1242 = vmatprep.subr.bf16.mxu0 0
        %1243 = vmatpush1.bf16.msra.mxu0 0
        %1244 = vmatprep.mubr.bf16.mxu0 0
        %1245 = vmatmul.mubr.bf16.gmra.mrb[0].mxu0 %v1207
        %v1246 = vpop.f32.mrb[0].mxu0
        %v1247 = vadd.f32 0.0, %v1246
        %v1248 = vpop.f32.mrb[0].mxu0
        %v1249 = vpop.f32.mrb[0].mxu0
        %v1250 = vpop.f32.mrb[0].mxu0
        %1251 = vdwg.mxu0
        %1252 = vrot.lane.b32.xlu0 %v443, 100
        %v1253 = vpop.permute.xlu0 %1252
        %1254 = vrot.lane.b32.xlu0 %v511, 100
        %v1255 = vpop.permute.xlu0 %1254
        %v1257 = vsel %vm445, %v1253, 0
        %v1260 = vsel %vm445, %v1255, 0
        %1262 = vmatprep.subr.bf16.mxu0 0
        %1263 = vmatpush1.bf16.xpose.msra.mxu0 %v1260
        %1264 = vmatprep.subr.bf16.mxu0 0
        %1265 = vmatpush1.bf16.xpose.msra.mxu0 0
        %1266 = vmatprep.subr.bf16.mxu0 0
        %1267 = vmatpush1.bf16.xpose.msra.mxu0 0
        %1268 = vmatprep.subr.bf16.mxu0 0
        %1269 = vmatpush1.bf16.xpose.msra.mxu0 0
        %1270 = vmatprep.subr.bf16.mxu0 0
        %1271 = vmatpush1.bf16.xpose.msra.mxu0 0
        %1272 = vmatprep.subr.bf16.mxu0 0
        %1273 = vmatpush1.bf16.xpose.msra.mxu0 0
        %1274 = vmatprep.subr.bf16.mxu0 0
        %1275 = vmatpush1.bf16.xpose.msra.mxu0 0
        %1276 = vmatprep.subr.bf16.mxu0 0
        %1277 = vmatpush1.bf16.xpose.msra.mxu0 0
        %1278 = vmatprep.subr.bf16.mxu0 0
        %1279 = vmatpush1.bf16.xpose.msra.mxu0 0
        %1280 = vmatprep.subr.bf16.mxu0 0
        %1281 = vmatpush1.bf16.xpose.msra.mxu0 0
        %1282 = vmatprep.subr.bf16.mxu0 0
        %1283 = vmatpush1.bf16.xpose.msra.mxu0 0
        %1284 = vmatprep.subr.bf16.mxu0 0
        %1285 = vmatpush1.bf16.xpose.msra.mxu0 0
        %1286 = vmatprep.subr.bf16.mxu0 0
        %1287 = vmatpush1.bf16.xpose.msra.mxu0 0
        %1288 = vmatprep.subr.bf16.mxu0 0
        %1289 = vmatpush1.bf16.xpose.msra.mxu0 0
        %1290 = vmatprep.subr.bf16.mxu0 0
        %1291 = vmatpush1.bf16.xpose.msra.mxu0 0
        %1292 = vmatprep.subr.bf16.mxu0 0
        %1293 = vmatpush1.bf16.xpose.msra.mxu0 0
        %1294 = vmatprep.mubr.bf16.mxu0 0
        %1295 = vmatmul.mubr.bf16.gmra.mrb[0].mxu0 %v1257
        %v1296 = vpop.f32.mrb[0].mxu0
        %v1297 = vadd.f32 0.0, %v1296
        %v1298 = vpop.f32.mrb[0].mxu0
        %v1299 = vpop.f32.mrb[0].mxu0
        %v1300 = vpop.f32.mrb[0].mxu0
        %1301 = vdwg.mxu0
        %v1302 = vsel %vm492, %v1297, -inf
        %1303 = vmax.xlane.f32.xlu0 %v1302
        %v1304 = vpop.xlane.xlu0 %1303
        %v1305 = vsub.f32 %v1297, %v1304
        %v1306 = vmul.f32 %v1305, 1.442695
        %v1307 = vpow.pop %v1306
        %v1308 = vsel %vm492, %v1307, 0.0
        %1309 = vadd.xlane.f32.xlu0 %v1308
        %v1310 = vpop.xlane.xlu0 %1309
        %v1311 = vrcp.pop %v1310
        %v1312 = vmul.f32 %v1310, %v1311
        %v1313 = vsub.f32 2.0, %v1312
        %v1314 = vmul.f32 %v1311, %v1313
        %v1315 = vmul.f32 %v1307, %v1314
        %s1316 = scalar_lea.vmem %s320, 56 [#allocation10]
        %1317 = vst.msk [vmem:[%s1316] sm:$0xff] %vm492, %v1315
        %v1318 = vpack.c.bf16 %v1315, %v1315
        %1319 = vrot.lane.b32.xlu0 %v511, 68
        %v1320 = vpop.permute.xlu0 %1319
        %v1322 = vsel %vm492, %v1318, 0
        %v1325 = vsel %vm517, %v1320, 0
        %1327 = vmatprep.subr.bf16.mxu0 0
        %1328 = vmatpush1.bf16.msra.mxu0 %v1325
        %1329 = vmatprep.subr.bf16.mxu0 0
        %1330 = vmatpush1.bf16.msra.mxu0 0
        %1331 = vmatprep.subr.bf16.mxu0 0
        %1332 = vmatpush1.bf16.msra.mxu0 0
        %1333 = vmatprep.subr.bf16.mxu0 0
        %1334 = vmatpush1.bf16.msra.mxu0 0
        %1335 = vmatprep.subr.bf16.mxu0 0
        %1336 = vmatpush1.bf16.msra.mxu0 0
        %1337 = vmatprep.subr.bf16.mxu0 0
        %1338 = vmatpush1.bf16.msra.mxu0 0
        %1339 = vmatprep.subr.bf16.mxu0 0
        %1340 = vmatpush1.bf16.msra.mxu0 0
        %1341 = vmatprep.subr.bf16.mxu0 0
        %1342 = vmatpush1.bf16.msra.mxu0 0
        %1343 = vmatprep.subr.bf16.mxu0 0
        %1344 = vmatpush1.bf16.msra.mxu0 0
        %1345 = vmatprep.subr.bf16.mxu0 0
        %1346 = vmatpush1.bf16.msra.mxu0 0
        %1347 = vmatprep.subr.bf16.mxu0 0
        %1348 = vmatpush1.bf16.msra.mxu0 0
        %1349 = vmatprep.subr.bf16.mxu0 0
        %1350 = vmatpush1.bf16.msra.mxu0 0
        %1351 = vmatprep.subr.bf16.mxu0 0
        %1352 = vmatpush1.bf16.msra.mxu0 0
        %1353 = vmatprep.subr.bf16.mxu0 0
        %1354 = vmatpush1.bf16.msra.mxu0 0
        %1355 = vmatprep.subr.bf16.mxu0 0
        %1356 = vmatpush1.bf16.msra.mxu0 0
        %1357 = vmatprep.subr.bf16.mxu0 0
        %1358 = vmatpush1.bf16.msra.mxu0 0
        %1359 = vmatprep.mubr.bf16.mxu0 0
        %1360 = vmatmul.mubr.bf16.gmra.mrb[0].mxu0 %v1322
        %v1361 = vpop.f32.mrb[0].mxu0
        %v1362 = vadd.f32 0.0, %v1361
        %v1363 = vpop.f32.mrb[0].mxu0
        %v1364 = vpop.f32.mrb[0].mxu0
        %v1365 = vpop.f32.mrb[0].mxu0
        %1366 = vdwg.mxu0
        %1368 = vrot.lane.b32.xlu0 %v672, 4
        %v1369 = vpop.permute.xlu0 %1368
        %1372 = vrot.lane.b32.xlu0 %v787, 8
        %v1373 = vpop.permute.xlu0 %1372
        %1376 = vrot.lane.b32.xlu0 %v902, 12
        %v1377 = vpop.permute.xlu0 %1376
        %1380 = vrot.lane.b32.xlu0 %v1017, 16
        %v1381 = vpop.permute.xlu0 %1380
        %1384 = vrot.lane.b32.xlu0 %v1132, 20
        %v1385 = vpop.permute.xlu0 %1384
        %1388 = vrot.lane.b32.xlu0 %v1247, 24
        %v1389 = vpop.permute.xlu0 %1388
        %1392 = vrot.lane.b32.xlu0 %v1362, 28
        %v1393 = vpop.permute.xlu0 %1392
        %v1395 = vsel %vm445, %v556, %v1369
        %v1396 = vsel %vm492, %v1395, %v1373
        %vm1397 = vcmask 97280
        %v1398 = vsel %vm1397, %v1396, %v1377
        %vm1399 = vcmask 130048
        %v1400 = vsel %vm1399, %v1398, %v1381
        %vm1401 = vcmask 162816
        %v1402 = vsel %vm1401, %v1400, %v1385
        %vm1403 = vcmask 195584
        %v1404 = vsel %vm1403, %v1402, %v1389
        %vm1405 = vcmask 228352
        %v1406 = vsel %vm1405, %v1404, %v1393
        %1407 = vst.msk [vmem:[%s313] sm:$0xff] %vm399, %v1406
        %s1408 = sand.u32 %s147, 1
        %s1409 = scalar_lea.sflag [#allocation5], %s1408
        %s1410 = sand.u32 %s147, 1
        %s1411 = smul.addr %s1410, 8
        %s1412 = scalar_lea.vmem [#allocation9], %s1411
        %s1413 = sand.u32 %s175, 1
        %s1414 = scalar_lea.sflag [#allocation11], %s1413
        %s1415 = sand.u32 %s175, 1
        %s1416 = smul.addr %s1415, 64
        %s1417 = scalar_lea.vmem [#allocation10], %s1416
        // Predicated region
        $region53: #{tpu_custom_call.1} parent=35 // pred_check
          %p1418 = pneg %p157
        $region54: #{tpu_custom_call.1} parent=35 // pred_check_branch
          %1420 = sbr.rel (%p1418) target = $region56
        $region55: #{tpu_custom_call.1} parent=35 // pred_region
          %s1422 = ssub.s32 128, 128
          %1423 = vsyncadd %s1409, %s1422
          %s1424 = sadd.s32 %s34, %s33
          %s1425 = smul.addr %s1424, 128
          %s1426 = scalar_lea.hbm %s4, %s1425
          %s1428 = sshll.u32 %s1412, 4
          %s1429 = int_to_ptr.vmem [resolvable:$true] %s1428
          %1431 = dma.vmem_to_hbm [thread:$0]  %s1429, 128, %s1426, %s1409
        $region56: #{tpu_custom_call.1} parent=35 // pred_fallthru
          _
        // Predicated region
        $region57: #{tpu_custom_call.1} parent=35 // pred_check
          %p1432 = pneg %p185
        $region58: #{tpu_custom_call.1} parent=35 // pred_check_branch
          %1434 = sbr.rel (%p1432) target = $region60
        $region59: #{tpu_custom_call.1} parent=35 // pred_region
          %s1436 = ssub.s32 1024, 1024
          %1437 = vsyncadd %s1414, %s1436
          %s1438 = smul.addr %s33, 8
          %s1439 = sadd.s32 %s34, %s1438
          %s1440 = smul.addr %s1439, 128
          %s1441 = scalar_lea.hbm %s5, %s1440
          %s1442 = sshll.u32 %s1417, 4
          %s1443 = int_to_ptr.vmem [resolvable:$true] %s1442
          %1448 = dma.vmem_to_hbm [thread:$0]  %s1443, 1024, %s1441, %s1414, 128, 128, 8
        $region60: #{tpu_custom_call.1} parent=35 // pred_fallthru
          _
      $region36: #{tpu_custom_call.1} parent=5 // pred_fallthru
        _
      %p1449 = scmp.le.s32.totalorder 2, %s24
      // Predicated region
      $region61: #{tpu_custom_call.1} parent=5 // pred_check
        %p1450 = pneg %p1449
      $region62: #{tpu_custom_call.1} parent=5 // pred_check_branch
        %1452 = sbr.rel (%p1450) target = $region64
      $region63: #{tpu_custom_call.1} parent=5 // pred_region
        %s1453 = ssub.s32 %s24, 2
        // Predicated region
        $region65: #{tpu_custom_call.1} parent=63 // pred_check
          %p1454 = pneg %p163
        $region66: #{tpu_custom_call.1} parent=63 // pred_check_branch
          %1456 = sbr.rel (%p1454) target = $region68
        $region67: #{tpu_custom_call.1} parent=63 // pred_region
          %s1457 = sand.u32 %s148, 1
          %s1458 = scalar_lea.sflag [#allocation5], %s1457
          %s1459 = sand.u32 %s148, 1
          %s1460 = smul.addr %s1459, 8
          %s1461 = scalar_lea.vmem [#allocation9], %s1460
          %1462 = dma.done %s1458, 128
        $region68: #{tpu_custom_call.1} parent=63 // pred_fallthru
          _
        // Predicated region
        $region69: #{tpu_custom_call.1} parent=63 // pred_check
          %p1463 = pneg %p191
        $region70: #{tpu_custom_call.1} parent=63 // pred_check_branch
          %1465 = sbr.rel (%p1463) target = $region72
        $region71: #{tpu_custom_call.1} parent=63 // pred_region
          %s1466 = sand.u32 %s176, 1
          %s1467 = scalar_lea.sflag [#allocation11], %s1466
          %s1468 = sand.u32 %s176, 1
          %s1469 = smul.addr %s1468, 64
          %s1470 = scalar_lea.vmem [#allocation10], %s1469
          %1471 = dma.done %s1467, 1024
        $region72: #{tpu_custom_call.1} parent=63 // pred_fallthru
          _
      $region64: #{tpu_custom_call.1} parent=5 // pred_fallthru
        _
    $region6: #{tpu_custom_call.1} parent=1 // loop_footer
      %s28 = sadd.s32 1, %s24
    $region7: #{tpu_custom_call.1} parent=1 // loop_footer_branch
      %23 = sbr.rel target = $region3
    $region8: #{tpu_custom_call.1} parent=1 // loop_exit
      _
    %1472 = vsyncpa [#allocation4], 1
    %s1473 = scalar_lea.sflag [#allocation4], 1
    %1474 = vsyncpa %s1473, 1
    %1475 = vsyncpa [#allocation7], 1
    %s1476 = scalar_lea.sflag [#allocation7], 1
    %1477 = vsyncpa %s1476, 1
    %1478 = vsyncpa [#allocation5], 1
    %s1479 = scalar_lea.sflag [#allocation5], 1
    %1480 = vsyncpa %s1479, 1
    %1481 = vsyncpa [#allocation11], 1
    %s1482 = scalar_lea.sflag [#allocation11], 1
    %1483 = vsyncpa %s1482, 1

</llo_original>
